<compile_context>
chip_gen: v6e
topology: v6e:2x2x1
jax: 0.10.0
libtpu: 0.0.40
codegen_flags: <defaults>
</compile_context>

<pallas_src>
import math

import jax
import jax.numpy as jnp
from jax import lax
from jax.experimental import pallas as pl
from jax.experimental.pallas import tpu as pltpu

BN_EPS = 1e-5
HID = 512


def px_forward(y, w, p, *, tile_rows=512):
    """PX forward. y: (B, T, K) f32, w: (B, E) f32 -> (B, T-2, D) f32."""
    B, T, K = y.shape
    E = w.shape[-1]
    L = T - 2
    assert L >= 1, "need T >= 3"
    M = B * L                                    # BN population (rows)
    D = p['w5'].shape[-1]
    Dp = ((D + 127) // 128) * 128                # lane-dense output width

    tL = min(L, tile_rows)                       # rows per grid step
    nLt = (L + tL - 1) // tL
    Lp = nLt * tL                                # L padded to a tile multiple
    Tp = Lp + 2

    f32, bf16 = jnp.float32, jnp.bfloat16

    # ---------------- tiny prologue (plain JAX) ----------------
    # concat(h, w) @ W == h @ W[:in_h] + (w @ W[in_h:]); the second term is
    # constant over L -> precompute it once per batch element.
    w1y = p['w1'][:3 * K].reshape(3, K, HID)     # f32 (3, K, 512)

    def _wproj(wpart):
        return jnp.dot(w.astype(bf16), wpart.astype(bf16),
                       preferred_element_type=f32).reshape(B, 1, HID)

    wp1 = _wproj(p['w1'][3 * K:])
    wh = {i: p[f'w{i}'][:HID].astype(bf16) for i in (2, 3, 4)}
    wpr = {i: _wproj(p[f'w{i}'][HID:]) for i in (2, 3, 4)}
    w5p = jnp.zeros((HID, Dp), f32).at[:, :D].set(p['w5']).astype(bf16)
    b5p = jnp.zeros((1, Dp), f32).at[:, :D].set(p['b5'].reshape(1, D))

    # Pad y along T so every shifted tL-row window is in bounds; padded rows
    # are masked out of the BN statistics below.
    y_in = jnp.pad(y, ((0, 0), (0, Tp - T), (0, 0))) if Tp > T else y

    # ---------------- kernel bodies (closures over tL, L, K) ----------------
    def _bdot(a, b):   # bf16 MXU inputs, f32 accumulation
        return jnp.dot(a.astype(bf16), b.astype(bf16),
                       preferred_element_type=f32)

    def _masked_stats(z, l_idx, st_ref):
        # per-tile partial (sum, sum of squares), excluding L-padding rows
        rows = lax.broadcasted_iota(jnp.int32, (tL, 1), 0) + l_idx * tL
        zm = jnp.where(rows < L, z, 0.0)
        st_ref[0, 0, 0:1, :] = jnp.sum(zm, axis=0, keepdims=True)
        st_ref[0, 0, 1:2, :] = jnp.sum(zm * zm, axis=0, keepdims=True)

    def k_first(y_ref, w1y_ref, wp_ref, z_ref, st_ref):
        # layer1 Linear: 3-row sliding unfold of y as three shifted matmuls
        l = pl.program_id(1)
        l0 = l * tL
        z = _bdot(y_ref[0, pl.ds(l0, tL), :], w1y_ref[0])
        z = z + _bdot(y_ref[0, pl.ds(l0 + 1, tL), :], w1y_ref[1])
        z = z + _bdot(y_ref[0, pl.ds(l0 + 2, tL), :], w1y_ref[2])
        z = z + wp_ref[0]                 # per-batch w-term (b1 is BN-dead)
        z_ref[0] = z
        _masked_stats(z, l, st_ref)

    def k_mid(z_ref, sc_ref, sh_ref, wh_ref, wp_ref, o_ref, st_ref):
        # fused: BN(prev layer, fused scale/shift) + ReLU + next Linear + stats
        h = jnp.maximum(z_ref[0] * sc_ref[...] + sh_ref[...], 0.0)   # f32 BN
        z = _bdot(h, wh_ref[...]) + wp_ref[0]
        o_ref[0] = z
        _masked_stats(z, pl.program_id(1), st_ref)

    def k_last(z_ref, sc_ref, sh_ref, w5_ref, b5_ref, o_ref):
        h = jnp.maximum(z_ref[0] * sc_ref[...] + sh_ref[...], 0.0)
        o_ref[0] = _bdot(h, w5_ref[...]) + b5_ref[...]

    # ---------------- pallas_call plumbing ----------------
    grid = (B, nLt)
    cparams = pltpu.CompilerParams(
        dimension_semantics=("parallel", "parallel"))

    z_shape = jax.ShapeDtypeStruct((B, Lp, HID), f32)
    st_shape = jax.ShapeDtypeStruct((B, nLt, 2, HID), f32)
    z_spec = pl.BlockSpec((1, tL, HID), lambda b, l: (b, l, 0))
    st_spec = pl.BlockSpec((1, 1, 2, HID), lambda b, l: (b, l, 0, 0))
    vec_spec = pl.BlockSpec((1, HID), lambda b, l: (0, 0))
    wp_spec = pl.BlockSpec((1, 1, HID), lambda b, l: (b, 0, 0))

    first_call = pl.pallas_call(
        k_first, grid=grid,
        in_specs=[pl.BlockSpec((1, Tp, K), lambda b, l: (b, 0, 0)),
                  pl.BlockSpec((3, K, HID), lambda b, l: (0, 0, 0)),
                  wp_spec],
        out_specs=[z_spec, st_spec],
        out_shape=[z_shape, st_shape],
        compiler_params=cparams)

    mid_call = pl.pallas_call(
        k_mid, grid=grid,
        in_specs=[z_spec, vec_spec, vec_spec,
                  pl.BlockSpec((HID, HID), lambda b, l: (0, 0)),
                  wp_spec],
        out_specs=[z_spec, st_spec],
        out_shape=[z_shape, st_shape],
        compiler_params=cparams)

    last_call = pl.pallas_call(
        k_last, grid=grid,
        in_specs=[z_spec, vec_spec, vec_spec,
                  pl.BlockSpec((HID, Dp), lambda b, l: (0, 0)),
                  pl.BlockSpec((1, Dp), lambda b, l: (0, 0))],
        out_specs=pl.BlockSpec((1, tL, Dp), lambda b, l: (b, l, 0)),
        out_shape=jax.ShapeDtypeStruct((B, Lp, Dp), f32),
        compiler_params=cparams)

    def bn_scale_shift(st, g, be):
        # reduce per-tile partials -> training-mode BN fused scale/shift (f32)
        s = jnp.sum(st, axis=(0, 1))                       # (2, HID)
        mean = s[0] / M
        var = jnp.maximum(s[1] / M - mean * mean, 0.0)     # biased variance
        inv = lax.rsqrt(var + BN_EPS)
        scale = g * inv
        shift = be - mean * scale
        return scale.reshape(1, HID), shift.reshape(1, HID)

    # ---------------- layer chain ----------------
    z, st = first_call(y_in, w1y, wp1)
    for i in (2, 3, 4):
        scale, shift = bn_scale_shift(st, p[f'g{i-1}'], p[f'be{i-1}'])
        z, st = mid_call(z, scale, shift, wh[i], wpr[i])
    scale, shift = bn_scale_shift(st, p['g4'], p['be4'])
    out = last_call(z, scale, shift, w5p, b5p)
    return out[:, :L, :D]


def px_reference(y, w, p):
    """Pure-JAX emulation of the PyTorch module: unfold + concat with w,
    Linear (+bias), training-mode BatchNorm1d (stats over (B, L), biased var,
    two-pass), ReLU.  Matmuls use the same bf16-input / f32-accumulate
    precision as the kernel."""
    B, T, K = y.shape
    E = w.shape[-1]
    L = T - 2
    y_unf = jnp.concatenate([y[:, 0:L], y[:, 1:L + 1], y[:, 2:L + 2]], axis=-1)
    wrep = jnp.broadcast_to(w[:, None, :], (B, L, E))

    def mm(a, b):
        return jnp.dot(a.astype(jnp.bfloat16), b.astype(jnp.bfloat16),
                       preferred_element_type=jnp.float32)

    def bn_relu(h, g, be):
        mean = jnp.mean(h, axis=0)
        var = jnp.mean(jnp.square(h - mean), axis=0)       # biased
        hn = (h - mean) * lax.rsqrt(var + BN_EPS)
        return jnp.maximum(hn * g + be, 0.0)

    x = jnp.concatenate([y_unf, wrep], axis=-1).reshape(B * L, -1)
    h = bn_relu(mm(x, p['w1']) + p['b1'], p['g1'], p['be1'])
    for i in (2, 3, 4):
        hx = jnp.concatenate([h.reshape(B, L, HID), wrep],
                             axis=-1).reshape(B * L, -1)
        h = bn_relu(mm(hx, p[f'w{i}']) + p[f'b{i}'], p[f'g{i}'], p[f'be{i}'])
    out = mm(h, p['w5']) + p['b5']
    return out.reshape(B, L, -1)


def init_params(key, K, E, D):
    """PyTorch-style Linear init (U(+-1/sqrt(fan_in))); BN gamma=1, beta=0."""
    def linear(k, fan_in, fan_out):
        k1, k2 = jax.random.split(k)
        bound = 1.0 / math.sqrt(fan_in)
        Wt = jax.random.uniform(k1, (fan_in, fan_out), jnp.float32, -bound, bound)
        b = jax.random.uniform(k2, (fan_out,), jnp.float32, -bound, bound)
        return Wt, b

    keys = jax.random.split(key, 5)
    p = {}
    p['w1'], p['b1'] = linear(keys[0], 3 * K + E, HID)
    for i, kk in zip((2, 3, 4), keys[1:4]):
        p[f'w{i}'], p[f'b{i}'] = linear(kk, HID + E, HID)
    p['w5'], p['b5'] = linear(keys[4], HID, D)
    for i in (1, 2, 3, 4):
        p[f'g{i}'] = jnp.ones((HID,), jnp.float32)
        p[f'be{i}'] = jnp.zeros((HID,), jnp.float32)
    return p


if __name__ == "__main__":
    key = jax.random.PRNGKey(0)
    ky, kw, kp = jax.random.split(key, 3)

    B, T, K, E, D = 2, 8, 4, 8, 16          # y: (B, T, K), w: (B, E)
    y = jax.random.normal(ky, (B, T, K), jnp.float32)
    w = jax.random.normal(kw, (B, E), jnp.float32)
    params = init_params(kp, K, E, D)

    fwd = jax.jit(px_forward)
    out = jax.block_until_ready(fwd(y, w, params))
    assert out.shape == (B, T - 2, D), out.shape

    ref = px_reference(y, w, params)
    err = float(jnp.max(jnp.abs(out - ref)))
    assert jnp.allclose(out, ref, rtol=1e-2, atol=1e-2), f"max abs err {err}"

    print("KERNEL_OK")
</pallas_src>

<mosaic_0001>
module attributes {stable_mosaic.version = 11 : i64} {
  func.func @k_first(%arg0: i32, %arg1: i32, %arg2: memref<1x8x4xf32, #tpu.memory_space<vmem>>, %arg3: memref<3x4x512xf32, #tpu.memory_space<vmem>>, %arg4: memref<1x1x512xf32, #tpu.memory_space<vmem>>, %arg5: memref<1x6x512xf32, #tpu.memory_space<vmem>>, %arg6: memref<1x1x2x512xf32, #tpu.memory_space<vmem>>) attributes {dimension_semantics = [#tpu.dimension_semantics<parallel>, #tpu.dimension_semantics<parallel>], iteration_bounds = array<i64: 2, 1>, scalar_prefetch = 0 : i64, scratch_operands = 0 : i64, tpu.core_type = #tpu.core_type<tc>, window_params = [{transform_indices = @transform_0, window_bounds = array<i64: 1, 8, 4>}, {pipeline_mode = #tpu.pipeline_mode<synchronous>, transform_indices = @transform_1, window_bounds = array<i64: 3, 4, 512>}, {transform_indices = @transform_2, window_bounds = array<i64: 1, 1, 512>}, {transform_indices = @transform_3, window_bounds = array<i64: 1, 6, 512>}, {transform_indices = @transform_4, window_bounds = array<i64: 1, 1, 2, 512>}]} {
    %c6_i32 = arith.constant 6 : i32
    %0 = arith.muli %arg1, %c6_i32 : i32
    %c0 = arith.constant 0 : index
    %1 = arith.index_cast %0 : i32 to index
    %c0_0 = arith.constant 0 : index
    %2 = vector.load %arg2[%c0, %1, %c0_0] : memref<1x8x4xf32, #tpu.memory_space<vmem>>, vector<1x6x4xf32>
    %3 = vector.shape_cast %2 : vector<1x6x4xf32> to vector<6x4xf32>
    %c0_1 = arith.constant 0 : index
    %c0_2 = arith.constant 0 : index
    %c0_3 = arith.constant 0 : index
    %4 = vector.load %arg3[%c0_1, %c0_2, %c0_3] : memref<3x4x512xf32, #tpu.memory_space<vmem>>, vector<1x4x512xf32>
    %5 = vector.shape_cast %4 : vector<1x4x512xf32> to vector<4x512xf32>
    %6 = arith.truncf %3 : vector<6x4xf32> to vector<6x4xbf16>
    %7 = arith.truncf %5 : vector<4x512xf32> to vector<4x512xbf16>
    %cst = arith.constant dense<0.000000e+00> : vector<6x512xf32>
    %8 = tpu.matmul %6, %7, %cst {dimension_numbers = #tpu.dot_dimension_numbers<[1], [0], [0], [1], [0, 0, 1, 1], [], []>} : vector<6x4xbf16>, vector<4x512xbf16>, vector<6x512xf32> -> vector<6x512xf32>
    %c1_i32 = arith.constant 1 : i32
    %9 = arith.addi %0, %c1_i32 : i32
    %c0_4 = arith.constant 0 : index
    %10 = arith.index_cast %9 : i32 to index
    %c0_5 = arith.constant 0 : index
    %11 = vector.load %arg2[%c0_4, %10, %c0_5] : memref<1x8x4xf32, #tpu.memory_space<vmem>>, vector<1x6x4xf32>
    %12 = vector.shape_cast %11 : vector<1x6x4xf32> to vector<6x4xf32>
    %c1 = arith.constant 1 : index
    %c0_6 = arith.constant 0 : index
    %c0_7 = arith.constant 0 : index
    %13 = vector.load %arg3[%c1, %c0_6, %c0_7] : memref<3x4x512xf32, #tpu.memory_space<vmem>>, vector<1x4x512xf32>
    %14 = vector.shape_cast %13 : vector<1x4x512xf32> to vector<4x512xf32>
    %15 = arith.truncf %12 : vector<6x4xf32> to vector<6x4xbf16>
    %16 = arith.truncf %14 : vector<4x512xf32> to vector<4x512xbf16>
    %cst_8 = arith.constant dense<0.000000e+00> : vector<6x512xf32>
    %17 = tpu.matmul %15, %16, %cst_8 {dimension_numbers = #tpu.dot_dimension_numbers<[1], [0], [0], [1], [0, 0, 1, 1], [], []>} : vector<6x4xbf16>, vector<4x512xbf16>, vector<6x512xf32> -> vector<6x512xf32>
    %18 = arith.addf %8, %17 : vector<6x512xf32>
    %c2_i32 = arith.constant 2 : i32
    %19 = arith.addi %0, %c2_i32 : i32
    %c0_9 = arith.constant 0 : index
    %20 = arith.index_cast %19 : i32 to index
    %c0_10 = arith.constant 0 : index
    %21 = vector.load %arg2[%c0_9, %20, %c0_10] : memref<1x8x4xf32, #tpu.memory_space<vmem>>, vector<1x6x4xf32>
    %22 = vector.shape_cast %21 : vector<1x6x4xf32> to vector<6x4xf32>
    %c2 = arith.constant 2 : index
    %c0_11 = arith.constant 0 : index
    %c0_12 = arith.constant 0 : index
    %23 = vector.load %arg3[%c2, %c0_11, %c0_12] : memref<3x4x512xf32, #tpu.memory_space<vmem>>, vector<1x4x512xf32>
    %24 = vector.shape_cast %23 : vector<1x4x512xf32> to vector<4x512xf32>
    %25 = arith.truncf %22 : vector<6x4xf32> to vector<6x4xbf16>
    %26 = arith.truncf %24 : vector<4x512xf32> to vector<4x512xbf16>
    %cst_13 = arith.constant dense<0.000000e+00> : vector<6x512xf32>
    %27 = tpu.matmul %25, %26, %cst_13 {dimension_numbers = #tpu.dot_dimension_numbers<[1], [0], [0], [1], [0, 0, 1, 1], [], []>} : vector<6x4xbf16>, vector<4x512xbf16>, vector<6x512xf32> -> vector<6x512xf32>
    %28 = arith.addf %18, %27 : vector<6x512xf32>
    %c0_14 = arith.constant 0 : index
    %c0_15 = arith.constant 0 : index
    %c0_16 = arith.constant 0 : index
    %29 = vector.load %arg4[%c0_14, %c0_15, %c0_16] : memref<1x1x512xf32, #tpu.memory_space<vmem>>, vector<1x1x512xf32>
    %30 = vector.shape_cast %29 : vector<1x1x512xf32> to vector<1x512xf32>
    %31 = vector.broadcast %30 : vector<1x512xf32> to vector<6x512xf32>
    %32 = arith.addf %28, %31 : vector<6x512xf32>
    %c0_17 = arith.constant 0 : index
    %c0_18 = arith.constant 0 : index
    %c0_19 = arith.constant 0 : index
    %33 = vector.load %arg5[%c0_17, %c0_18, %c0_19] : memref<1x6x512xf32, #tpu.memory_space<vmem>>, vector<1x6x512xf32>
    %34 = vector.shape_cast %33 : vector<1x6x512xf32> to vector<6x512xf32>
    %35 = vector.shape_cast %32 : vector<6x512xf32> to vector<1x6x512xf32>
    tpu.vector_store %arg5[%c0_17, %c0_18, %c0_19], %35 {strides = array<i32>} : memref<1x6x512xf32, #tpu.memory_space<vmem>>, vector<1x6x512xf32>,
    %36 = tpu.iota {dimensions = array<i32: 0>} : vector<6x1xi32>
    %c6_i32_20 = arith.constant 6 : i32
    %37 = arith.muli %arg1, %c6_i32_20 : i32
    %38 = vector.broadcast %37 : i32 to vector<6x1xi32>
    %39 = arith.addi %36, %38 : vector<6x1xi32>
    %c6_i32_21 = arith.constant 6 : i32
    %40 = vector.broadcast %c6_i32_21 : i32 to vector<6x1xi32>
    %41 = arith.cmpi slt, %39, %40 : vector<6x1xi32>
    %cst_22 = arith.constant 0.000000e+00 : f32
    %42 = vector.shape_cast %41 : vector<6x1xi1> to vector<6x1xi1>
    %43 = vector.broadcast %42 : vector<6x1xi1> to vector<6x512xi1>
    %44 = vector.broadcast %cst_22 : f32 to vector<6x512xf32>
    %45 = arith.select %43, %32, %44 : vector<6x512xi1>, vector<6x512xf32>
    %cst_23 = arith.constant dense<0.000000e+00> : vector<512xf32>
    %46 = vector.multi_reduction <add>, %45, %cst_23 [0] : vector<6x512xf32> to vector<512xf32>
    %47 = vector.shape_cast %46 : vector<512xf32> to vector<1x512xf32>
    %c0_24 = arith.constant 0 : index
    %c0_25 = arith.constant 0 : index
    %c0_26 = arith.constant 0 : index
    %c0_27 = arith.constant 0 : index
    %48 = vector.load %arg6[%c0_24, %c0_25, %c0_26, %c0_27] : memref<1x1x2x512xf32, #tpu.memory_space<vmem>>, vector<1x1x1x512xf32>
    %49 = vector.shape_cast %48 : vector<1x1x1x512xf32> to vector<1x512xf32>
    %50 = vector.shape_cast %47 : vector<1x512xf32> to vector<1x1x1x512xf32>
    tpu.vector_store %arg6[%c0_24, %c0_25, %c0_26, %c0_27], %50 {strides = array<i32>} : memref<1x1x2x512xf32, #tpu.memory_space<vmem>>, vector<1x1x1x512xf32>,
    %51 = arith.mulf %45, %45 : vector<6x512xf32>
    %cst_28 = arith.constant dense<0.000000e+00> : vector<512xf32>
    %52 = vector.multi_reduction <add>, %51, %cst_28 [0] : vector<6x512xf32> to vector<512xf32>
    %53 = vector.shape_cast %52 : vector<512xf32> to vector<1x512xf32>
    %c0_29 = arith.constant 0 : index
    %c0_30 = arith.constant 0 : index
    %c1_31 = arith.constant 1 : index
    %c0_32 = arith.constant 0 : index
    %54 = vector.load %arg6[%c0_29, %c0_30, %c1_31, %c0_32] : memref<1x1x2x512xf32, #tpu.memory_space<vmem>>, vector<1x1x1x512xf32>
    %55 = vector.shape_cast %54 : vector<1x1x1x512xf32> to vector<1x512xf32>
    %56 = vector.shape_cast %53 : vector<1x512xf32> to vector<1x1x1x512xf32>
    tpu.vector_store %arg6[%c0_29, %c0_30, %c1_31, %c0_32], %56 {strides = array<i32>} : memref<1x1x2x512xf32, #tpu.memory_space<vmem>>, vector<1x1x1x512xf32>,
    return
  }
  func.func @transform_0(%arg0: i32, %arg1: i32) -> (i32, i32, i32) {
    %c0_i32 = arith.constant 0 : i32
    %c0_i32_0 = arith.constant 0 : i32
    %c0_i32_1 = arith.constant 0 : i32
    return %arg0, %c0_i32, %c0_i32_0 : i32, i32, i32
  }
  func.func @transform_1(%arg0: i32, %arg1: i32) -> (i32, i32, i32) {
    %c0_i32 = arith.constant 0 : i32
    %c0_i32_0 = arith.constant 0 : i32
    %c0_i32_1 = arith.constant 0 : i32
    %c0_i32_2 = arith.constant 0 : i32
    return %c0_i32, %c0_i32_0, %c0_i32_1 : i32, i32, i32
  }
  func.func @transform_2(%arg0: i32, %arg1: i32) -> (i32, i32, i32) {
    %c0_i32 = arith.constant 0 : i32
    %c0_i32_0 = arith.constant 0 : i32
    %c0_i32_1 = arith.constant 0 : i32
    return %arg0, %c0_i32, %c0_i32_0 : i32, i32, i32
  }
  func.func @transform_3(%arg0: i32, %arg1: i32) -> (i32, i32, i32) {
    %c0_i32 = arith.constant 0 : i32
    %c0_i32_0 = arith.constant 0 : i32
    return %arg0, %arg1, %c0_i32 : i32, i32, i32
  }
  func.func @transform_4(%arg0: i32, %arg1: i32) -> (i32, i32, i32, i32) {
    %c0_i32 = arith.constant 0 : i32
    %c0_i32_0 = arith.constant 0 : i32
    %c0_i32_1 = arith.constant 0 : i32
    return %arg0, %arg1, %c0_i32, %c0_i32_0 : i32, i32, i32, i32
  }
}

module attributes {stable_mosaic.version = 11 : i64} {
  func.func @k_mid(%arg0: i32, %arg1: i32, %arg2: memref<1x6x512xf32, #tpu.memory_space<vmem>>, %arg3: memref<1x512xf32, #tpu.memory_space<vmem>>, %arg4: memref<1x512xf32, #tpu.memory_space<vmem>>, %arg5: memref<512x512xbf16, #tpu.memory_space<vmem>>, %arg6: memref<1x1x512xf32, #tpu.memory_space<vmem>>, %arg7: memref<1x6x512xf32, #tpu.memory_space<vmem>>, %arg8: memref<1x1x2x512xf32, #tpu.memory_space<vmem>>) attributes {dimension_semantics = [#tpu.dimension_semantics<parallel>, #tpu.dimension_semantics<parallel>], iteration_bounds = array<i64: 2, 1>, scalar_prefetch = 0 : i64, scratch_operands = 0 : i64, tpu.core_type = #tpu.core_type<tc>, window_params = [{transform_indices = @transform_0, window_bounds = array<i64: 1, 6, 512>}, {pipeline_mode = #tpu.pipeline_mode<synchronous>, transform_indices = @transform_1, window_bounds = array<i64: 1, 512>}, {pipeline_mode = #tpu.pipeline_mode<synchronous>, transform_indices = @transform_2, window_bounds = array<i64: 1, 512>}, {pipeline_mode = #tpu.pipeline_mode<synchronous>, transform_indices = @transform_3, window_bounds = array<i64: 512, 512>}, {transform_indices = @transform_4, window_bounds = array<i64: 1, 1, 512>}, {transform_indices = @transform_5, window_bounds = array<i64: 1, 6, 512>}, {transform_indices = @transform_6, window_bounds = array<i64: 1, 1, 2, 512>}]} {
    %c0 = arith.constant 0 : index
    %c0_0 = arith.constant 0 : index
    %c0_1 = arith.constant 0 : index
    %0 = vector.load %arg2[%c0, %c0_0, %c0_1] : memref<1x6x512xf32, #tpu.memory_space<vmem>>, vector<1x6x512xf32>
    %1 = vector.shape_cast %0 : vector<1x6x512xf32> to vector<6x512xf32>
    %c0_2 = arith.constant 0 : index
    %c0_3 = arith.constant 0 : index
    %2 = vector.load %arg3[%c0_2, %c0_3] : memref<1x512xf32, #tpu.memory_space<vmem>>, vector<1x512xf32>
    %3 = vector.broadcast %2 : vector<1x512xf32> to vector<6x512xf32>
    %4 = arith.mulf %1, %3 : vector<6x512xf32>
    %c0_4 = arith.constant 0 : index
    %c0_5 = arith.constant 0 : index
    %5 = vector.load %arg4[%c0_4, %c0_5] : memref<1x512xf32, #tpu.memory_space<vmem>>, vector<1x512xf32>
    %6 = vector.broadcast %5 : vector<1x512xf32> to vector<6x512xf32>
    %7 = arith.addf %4, %6 : vector<6x512xf32>
    %cst = arith.constant 0.000000e+00 : f32
    %8 = vector.broadcast %cst : f32 to vector<6x512xf32>
    %9 = arith.maximumf %7, %8 : vector<6x512xf32>
    %c0_6 = arith.constant 0 : index
    %c0_7 = arith.constant 0 : index
    %10 = vector.load %arg5[%c0_6, %c0_7] : memref<512x512xbf16, #tpu.memory_space<vmem>>, vector<512x512xbf16>
    %11 = arith.truncf %9 : vector<6x512xf32> to vector<6x512xbf16>
    %cst_8 = arith.constant dense<0.000000e+00> : vector<6x512xf32>
    %12 = tpu.matmul %11, %10, %cst_8 {dimension_numbers = #tpu.dot_dimension_numbers<[1], [0], [0], [1], [0, 0, 1, 1], [], []>} : vector<6x512xbf16>, vector<512x512xbf16>, vector<6x512xf32> -> vector<6x512xf32>
    %c0_9 = arith.constant 0 : index
    %c0_10 = arith.constant 0 : index
    %c0_11 = arith.constant 0 : index
    %13 = vector.load %arg6[%c0_9, %c0_10, %c0_11] : memref<1x1x512xf32, #tpu.memory_space<vmem>>, vector<1x1x512xf32>
    %14 = vector.shape_cast %13 : vector<1x1x512xf32> to vector<1x512xf32>
    %15 = vector.broadcast %14 : vector<1x512xf32> to vector<6x512xf32>
    %16 = arith.addf %12, %15 : vector<6x512xf32>
    %c0_12 = arith.constant 0 : index
    %c0_13 = arith.constant 0 : index
    %c0_14 = arith.constant 0 : index
    %17 = vector.load %arg7[%c0_12, %c0_13, %c0_14] : memref<1x6x512xf32, #tpu.memory_space<vmem>>, vector<1x6x512xf32>
    %18 = vector.shape_cast %17 : vector<1x6x512xf32> to vector<6x512xf32>
    %19 = vector.shape_cast %16 : vector<6x512xf32> to vector<1x6x512xf32>
    tpu.vector_store %arg7[%c0_12, %c0_13, %c0_14], %19 {strides = array<i32>} : memref<1x6x512xf32, #tpu.memory_space<vmem>>, vector<1x6x512xf32>,
    %20 = tpu.iota {dimensions = array<i32: 0>} : vector<6x1xi32>
    %c6_i32 = arith.constant 6 : i32
    %21 = arith.muli %arg1, %c6_i32 : i32
    %22 = vector.broadcast %21 : i32 to vector<6x1xi32>
    %23 = arith.addi %20, %22 : vector<6x1xi32>
    %c6_i32_15 = arith.constant 6 : i32
    %24 = vector.broadcast %c6_i32_15 : i32 to vector<6x1xi32>
    %25 = arith.cmpi slt, %23, %24 : vector<6x1xi32>
    %cst_16 = arith.constant 0.000000e+00 : f32
    %26 = vector.shape_cast %25 : vector<6x1xi1> to vector<6x1xi1>
    %27 = vector.broadcast %26 : vector<6x1xi1> to vector<6x512xi1>
    %28 = vector.broadcast %cst_16 : f32 to vector<6x512xf32>
    %29 = arith.select %27, %16, %28 : vector<6x512xi1>, vector<6x512xf32>
    %cst_17 = arith.constant dense<0.000000e+00> : vector<512xf32>
    %30 = vector.multi_reduction <add>, %29, %cst_17 [0] : vector<6x512xf32> to vector<512xf32>
    %31 = vector.shape_cast %30 : vector<512xf32> to vector<1x512xf32>
    %c0_18 = arith.constant 0 : index
    %c0_19 = arith.constant 0 : index
    %c0_20 = arith.constant 0 : index
    %c0_21 = arith.constant 0 : index
    %32 = vector.load %arg8[%c0_18, %c0_19, %c0_20, %c0_21] : memref<1x1x2x512xf32, #tpu.memory_space<vmem>>, vector<1x1x1x512xf32>
    %33 = vector.shape_cast %32 : vector<1x1x1x512xf32> to vector<1x512xf32>
    %34 = vector.shape_cast %31 : vector<1x512xf32> to vector<1x1x1x512xf32>
    tpu.vector_store %arg8[%c0_18, %c0_19, %c0_20, %c0_21], %34 {strides = array<i32>} : memref<1x1x2x512xf32, #tpu.memory_space<vmem>>, vector<1x1x1x512xf32>,
    %35 = arith.mulf %29, %29 : vector<6x512xf32>
    %cst_22 = arith.constant dense<0.000000e+00> : vector<512xf32>
    %36 = vector.multi_reduction <add>, %35, %cst_22 [0] : vector<6x512xf32> to vector<512xf32>
    %37 = vector.shape_cast %36 : vector<512xf32> to vector<1x512xf32>
    %c0_23 = arith.constant 0 : index
    %c0_24 = arith.constant 0 : index
    %c1 = arith.constant 1 : index
    %c0_25 = arith.constant 0 : index
    %38 = vector.load %arg8[%c0_23, %c0_24, %c1, %c0_25] : memref<1x1x2x512xf32, #tpu.memory_space<vmem>>, vector<1x1x1x512xf32>
    %39 = vector.shape_cast %38 : vector<1x1x1x512xf32> to vector<1x512xf32>
    %40 = vector.shape_cast %37 : vector<1x512xf32> to vector<1x1x1x512xf32>
    tpu.vector_store %arg8[%c0_23, %c0_24, %c1, %c0_25], %40 {strides = array<i32>} : memref<1x1x2x512xf32, #tpu.memory_space<vmem>>, vector<1x1x1x512xf32>,
    return
  }
  func.func @transform_0(%arg0: i32, %arg1: i32) -> (i32, i32, i32) {
    %c0_i32 = arith.constant 0 : i32
    %c0_i32_0 = arith.constant 0 : i32
    return %arg0, %arg1, %c0_i32 : i32, i32, i32
  }
  func.func @transform_1(%arg0: i32, %arg1: i32) -> (i32, i32) {
    %c0_i32 = arith.constant 0 : i32
    %c0_i32_0 = arith.constant 0 : i32
    %c0_i32_1 = arith.constant 0 : i32
    return %c0_i32, %c0_i32_0 : i32, i32
  }
  func.func @transform_2(%arg0: i32, %arg1: i32) -> (i32, i32) {
    %c0_i32 = arith.constant 0 : i32
    %c0_i32_0 = arith.constant 0 : i32
    %c0_i32_1 = arith.constant 0 : i32
    return %c0_i32, %c0_i32_0 : i32, i32
  }
  func.func @transform_3(%arg0: i32, %arg1: i32) -> (i32, i32) {
    %c0_i32 = arith.constant 0 : i32
    %c0_i32_0 = arith.constant 0 : i32
    %c0_i32_1 = arith.constant 0 : i32
    return %c0_i32, %c0_i32_0 : i32, i32
  }
  func.func @transform_4(%arg0: i32, %arg1: i32) -> (i32, i32, i32) {
    %c0_i32 = arith.constant 0 : i32
    %c0_i32_0 = arith.constant 0 : i32
    %c0_i32_1 = arith.constant 0 : i32
    return %arg0, %c0_i32, %c0_i32_0 : i32, i32, i32
  }
  func.func @transform_5(%arg0: i32, %arg1: i32) -> (i32, i32, i32) {
    %c0_i32 = arith.constant 0 : i32
    %c0_i32_0 = arith.constant 0 : i32
    return %arg0, %arg1, %c0_i32 : i32, i32, i32
  }
  func.func @transform_6(%arg0: i32, %arg1: i32) -> (i32, i32, i32, i32) {
    %c0_i32 = arith.constant 0 : i32
    %c0_i32_0 = arith.constant 0 : i32
    %c0_i32_1 = arith.constant 0 : i32
    return %arg0, %arg1, %c0_i32, %c0_i32_0 : i32, i32, i32, i32
  }
}

module attributes {stable_mosaic.version = 11 : i64} {
  func.func @k_last(%arg0: i32, %arg1: i32, %arg2: memref<1x6x512xf32, #tpu.memory_space<vmem>>, %arg3: memref<1x512xf32, #tpu.memory_space<vmem>>, %arg4: memref<1x512xf32, #tpu.memory_space<vmem>>, %arg5: memref<512x128xbf16, #tpu.memory_space<vmem>>, %arg6: memref<1x128xf32, #tpu.memory_space<vmem>>, %arg7: memref<1x6x128xf32, #tpu.memory_space<vmem>>) attributes {dimension_semantics = [#tpu.dimension_semantics<parallel>, #tpu.dimension_semantics<parallel>], iteration_bounds = array<i64: 2, 1>, scalar_prefetch = 0 : i64, scratch_operands = 0 : i64, tpu.core_type = #tpu.core_type<tc>, window_params = [{transform_indices = @transform_0, window_bounds = array<i64: 1, 6, 512>}, {pipeline_mode = #tpu.pipeline_mode<synchronous>, transform_indices = @transform_1, window_bounds = array<i64: 1, 512>}, {pipeline_mode = #tpu.pipeline_mode<synchronous>, transform_indices = @transform_2, window_bounds = array<i64: 1, 512>}, {pipeline_mode = #tpu.pipeline_mode<synchronous>, transform_indices = @transform_3, window_bounds = array<i64: 512, 128>}, {pipeline_mode = #tpu.pipeline_mode<synchronous>, transform_indices = @transform_4, window_bounds = array<i64: 1, 128>}, {transform_indices = @transform_5, window_bounds = array<i64: 1, 6, 128>}]} {
    %c0 = arith.constant 0 : index
    %c0_0 = arith.constant 0 : index
    %c0_1 = arith.constant 0 : index
    %0 = vector.load %arg2[%c0, %c0_0, %c0_1] : memref<1x6x512xf32, #tpu.memory_space<vmem>>, vector<1x6x512xf32>
    %1 = vector.shape_cast %0 : vector<1x6x512xf32> to vector<6x512xf32>
    %c0_2 = arith.constant 0 : index
    %c0_3 = arith.constant 0 : index
    %2 = vector.load %arg3[%c0_2, %c0_3] : memref<1x512xf32, #tpu.memory_space<vmem>>, vector<1x512xf32>
    %3 = vector.broadcast %2 : vector<1x512xf32> to vector<6x512xf32>
    %4 = arith.mulf %1, %3 : vector<6x512xf32>
    %c0_4 = arith.constant 0 : index
    %c0_5 = arith.constant 0 : index
    %5 = vector.load %arg4[%c0_4, %c0_5] : memref<1x512xf32, #tpu.memory_space<vmem>>, vector<1x512xf32>
    %6 = vector.broadcast %5 : vector<1x512xf32> to vector<6x512xf32>
    %7 = arith.addf %4, %6 : vector<6x512xf32>
    %cst = arith.constant 0.000000e+00 : f32
    %8 = vector.broadcast %cst : f32 to vector<6x512xf32>
    %9 = arith.maximumf %7, %8 : vector<6x512xf32>
    %c0_6 = arith.constant 0 : index
    %c0_7 = arith.constant 0 : index
    %10 = vector.load %arg5[%c0_6, %c0_7] : memref<512x128xbf16, #tpu.memory_space<vmem>>, vector<512x128xbf16>
    %11 = arith.truncf %9 : vector<6x512xf32> to vector<6x512xbf16>
    %cst_8 = arith.constant dense<0.000000e+00> : vector<6x128xf32>
    %12 = tpu.matmul %11, %10, %cst_8 {dimension_numbers = #tpu.dot_dimension_numbers<[1], [0], [0], [1], [0, 0, 1, 1], [], []>} : vector<6x512xbf16>, vector<512x128xbf16>, vector<6x128xf32> -> vector<6x128xf32>
    %c0_9 = arith.constant 0 : index
    %c0_10 = arith.constant 0 : index
    %13 = vector.load %arg6[%c0_9, %c0_10] : memref<1x128xf32, #tpu.memory_space<vmem>>, vector<1x128xf32>
    %14 = vector.broadcast %13 : vector<1x128xf32> to vector<6x128xf32>
    %15 = arith.addf %12, %14 : vector<6x128xf32>
    %c0_11 = arith.constant 0 : index
    %c0_12 = arith.constant 0 : index
    %c0_13 = arith.constant 0 : index
    %16 = vector.load %arg7[%c0_11, %c0_12, %c0_13] : memref<1x6x128xf32, #tpu.memory_space<vmem>>, vector<1x6x128xf32>
    %17 = vector.shape_cast %16 : vector<1x6x128xf32> to vector<6x128xf32>
    %18 = vector.shape_cast %15 : vector<6x128xf32> to vector<1x6x128xf32>
    tpu.vector_store %arg7[%c0_11, %c0_12, %c0_13], %18 {strides = array<i32>} : memref<1x6x128xf32, #tpu.memory_space<vmem>>, vector<1x6x128xf32>,
    return
  }
  func.func @transform_0(%arg0: i32, %arg1: i32) -> (i32, i32, i32) {
    %c0_i32 = arith.constant 0 : i32
    %c0_i32_0 = arith.constant 0 : i32
    return %arg0, %arg1, %c0_i32 : i32, i32, i32
  }
  func.func @transform_1(%arg0: i32, %arg1: i32) -> (i32, i32) {
    %c0_i32 = arith.constant 0 : i32
    %c0_i32_0 = arith.constant 0 : i32
    %c0_i32_1 = arith.constant 0 : i32
    return %c0_i32, %c0_i32_0 : i32, i32
  }
  func.func @transform_2(%arg0: i32, %arg1: i32) -> (i32, i32) {
    %c0_i32 = arith.constant 0 : i32
    %c0_i32_0 = arith.constant 0 : i32
    %c0_i32_1 = arith.constant 0 : i32
    return %c0_i32, %c0_i32_0 : i32, i32
  }
  func.func @transform_3(%arg0: i32, %arg1: i32) -> (i32, i32) {
    %c0_i32 = arith.constant 0 : i32
    %c0_i32_0 = arith.constant 0 : i32
    %c0_i32_1 = arith.constant 0 : i32
    return %c0_i32, %c0_i32_0 : i32, i32
  }
  func.func @transform_4(%arg0: i32, %arg1: i32) -> (i32, i32) {
    %c0_i32 = arith.constant 0 : i32
    %c0_i32_0 = arith.constant 0 : i32
    %c0_i32_1 = arith.constant 0 : i32
    return %c0_i32, %c0_i32_0 : i32, i32
  }
  func.func @transform_5(%arg0: i32, %arg1: i32) -> (i32, i32, i32) {
    %c0_i32 = arith.constant 0 : i32
    %c0_i32_0 = arith.constant 0 : i32
    return %arg0, %arg1, %c0_i32 : i32, i32, i32
  }
}

</mosaic_0001>

<llo_original>
// kernel: px_forward.5
$region0: #{px_forward.5}
  #allocation0 [shape = 'u32[]', space=smem, size = 0x4, offset = 0x4, fixed_abs, tag = 'smem constant byte address 0x4 - core index']
  #allocation1 [shape = 'u32[144,128]{1,0:T(1,128)}', space=vmem, size = 0x12000, scoped, tag = 'internal scratch']
  %s0 = inlined_call_operand.vmem [shape: f32[2,8,4], index: 0, kind: input, shape index: {}]
  %s1 = inlined_call_operand.vmem [shape: f32[3,4,512], index: 1, kind: input, shape index: {}]
  %s2 = inlined_call_operand.vmem [shape: f32[2,1,512], index: 2, kind: input, shape index: {}]
  %s3 = inlined_call_operand.vmem [shape: f32[2,6,512], index: 3, kind: output, shape index: {0}]
  %s4 = inlined_call_operand.vmem [shape: f32[2,1,2,512], index: 4, kind: output, shape index: {1}]
  %5 = xla_tuple %s3, %s4
  %s6 = sld [smem:[#allocation0]]
  $region53: #{px_forward.5} parent=0
    _
  %s8 = ssub.s32 1, %s6
  %s9 = scalar_select 0, %s8, %s6
  loop: start=0, step=1, limit=4
  $region2: #{px_forward.5} parent=0 // loop_pre_header
    _
  $region3: #{px_forward.5} parent=0 // loop_header
    %s11 = sphi 0, %s15
    %p12 = scmp.ge.s32.totalorder %s11, 4
    %s18 = sphi 0, %s30
    %s19 = sphi 0, %s26
    %s20 = sphi 0, %s18
    %s21 = sphi 0, %s19
    %s22 = sphi 0, %s20
    %s23 = sphi 0, %s21
    %s33 = sphi 0, %s35
    %s36 = sphi 0, %s33
    %s37 = sphi 0, %s36
    %s53 = sphi 0, %s37
    %s57 = sphi 0, %s57
    %s59 = sphi 0, %s57
    %s60 = sphi 0, %s59
    %s74 = sphi 0, %s60
    %s80 = sphi 0, %s82
    %s83 = sphi 0, %s80
    %s84 = sphi 0, %s83
    %s100 = sphi 0, %s84
    %s108 = sphi 0, %s110
    %s111 = sphi 0, %s108
    %s112 = sphi 0, %s111
    %s128 = sphi 0, %s112
    %s136 = sphi 0, %s138
    %s139 = sphi 0, %s136
    %s140 = sphi 0, %s139
    %s156 = sphi 0, %s140
  $region4: #{px_forward.5} parent=0 // loop_header_branch
    %14 = sbr.rel (%p12) target = $region8
  $region5: #{px_forward.5} parent=0 // loop_body
    %s16 = ssub.s32 %s11, 1
    %s17 = ssub.s32 %s11, 2
    %s24 = sadd.s32 1, %s19
    %p25 = scmp.ge.s32.totalorder %s24, 1
    %s26 = scalar_select %p25, 0, %s24
    %s27 = sadd.s32 1, %s18
    %s28 = scalar_select %p25, %s27, %s18
    %p29 = scmp.ge.s32.totalorder %s28, 2
    %s30 = scalar_select %p29, 0, %s28
    %s31 = ssub.s32 %s18, %s30
    %p32 = scmp.eq.s32.totalorder %s31, 0
    %s34 = sadd.s32 %s33, 1
    %s35 = scalar_select %p32, %s33, %s34
    %p38 = pneg %p32
    %p39 = scmp.eq.s32.totalorder %s11, 1
    %p40 = por %p38, %p39
    %p41 = scmp.ne.s32.totalorder %s33, %s36
    %p42 = scmp.eq.s32.totalorder %s11, 0
    %p43 = por %p41, %p42
    %p44 = scmp.ne.s32.totalorder %s33, %s36
    %p45 = scmp.eq.s32.totalorder %s16, 1
    %p46 = por %p44, %p45
    %p47 = scmp.ne.s32.totalorder %s36, %s37
    %p48 = scmp.eq.s32.totalorder %s16, 0
    %p49 = por %p47, %p48
    %p50 = scmp.ne.s32.totalorder %s36, %s37
    %p51 = scmp.eq.s32.totalorder %s17, 1
    %p52 = por %p50, %p51
    %p54 = scmp.ne.s32.totalorder %s37, %s53
    %p55 = scmp.eq.s32.totalorder %s17, 0
    %p56 = por %p54, %p55
    %s58 = sadd.s32 %s57, 1
    %p61 = scmp.eq.s32.totalorder %s11, 1
    %p62 = scmp.ne.s32.totalorder %s57, %s59
    %p63 = scmp.eq.s32.totalorder %s11, 0
    %p64 = por %p62, %p63
    %p65 = scmp.ne.s32.totalorder %s57, %s59
    %p66 = scmp.eq.s32.totalorder %s16, 1
    %p67 = por %p65, %p66
    %p68 = scmp.ne.s32.totalorder %s59, %s60
    %p69 = scmp.eq.s32.totalorder %s16, 0
    %p70 = por %p68, %p69
    %p71 = scmp.ne.s32.totalorder %s59, %s60
    %p72 = scmp.eq.s32.totalorder %s17, 1
    %p73 = por %p71, %p72
    %p75 = scmp.ne.s32.totalorder %s60, %s74
    %p76 = scmp.eq.s32.totalorder %s17, 0
    %p77 = por %p75, %p76
    %s78 = ssub.s32 %s18, %s30
    %p79 = scmp.eq.s32.totalorder %s78, 0
    %s81 = sadd.s32 %s80, 1
    %s82 = scalar_select %p79, %s80, %s81
    %p85 = pneg %p79
    %p86 = scmp.eq.s32.totalorder %s11, 1
    %p87 = por %p85, %p86
    %p88 = scmp.ne.s32.totalorder %s80, %s83
    %p89 = scmp.eq.s32.totalorder %s11, 0
    %p90 = por %p88, %p89
    %p91 = scmp.ne.s32.totalorder %s80, %s83
    %p92 = scmp.eq.s32.totalorder %s16, 1
    %p93 = por %p91, %p92
    %p94 = scmp.ne.s32.totalorder %s83, %s84
    %p95 = scmp.eq.s32.totalorder %s16, 0
    %p96 = por %p94, %p95
    %p97 = scmp.ne.s32.totalorder %s83, %s84
    %p98 = scmp.eq.s32.totalorder %s17, 1
    %p99 = por %p97, %p98
    %p101 = scmp.ne.s32.totalorder %s84, %s100
    %p102 = scmp.eq.s32.totalorder %s17, 0
    %p103 = por %p101, %p102
    %s104 = ssub.s32 %s18, %s30
    %s105 = ssub.s32 %s19, %s26
    %s106 = sor.u32 %s104, %s105
    %p107 = scmp.eq.s32.totalorder %s106, 0
    %s109 = sadd.s32 %s108, 1
    %s110 = scalar_select %p107, %s108, %s109
    %p113 = pneg %p107
    %p114 = scmp.eq.s32.totalorder %s11, 1
    %p115 = por %p113, %p114
    %p116 = scmp.ne.s32.totalorder %s108, %s111
    %p117 = scmp.eq.s32.totalorder %s11, 0
    %p118 = por %p116, %p117
    %p119 = scmp.ne.s32.totalorder %s108, %s111
    %p120 = scmp.eq.s32.totalorder %s16, 1
    %p121 = por %p119, %p120
    %p122 = scmp.ne.s32.totalorder %s111, %s112
    %p123 = scmp.eq.s32.totalorder %s16, 0
    %p124 = por %p122, %p123
    %p125 = scmp.ne.s32.totalorder %s111, %s112
    %p126 = scmp.eq.s32.totalorder %s17, 1
    %p127 = por %p125, %p126
    %p129 = scmp.ne.s32.totalorder %s112, %s128
    %p130 = scmp.eq.s32.totalorder %s17, 0
    %p131 = por %p129, %p130
    %s132 = ssub.s32 %s18, %s30
    %s133 = ssub.s32 %s19, %s26
    %s134 = sor.u32 %s132, %s133
    %p135 = scmp.eq.s32.totalorder %s134, 0
    %s137 = sadd.s32 %s136, 1
    %s138 = scalar_select %p135, %s136, %s137
    %p141 = pneg %p135
    %p142 = scmp.eq.s32.totalorder %s11, 1
    %p143 = por %p141, %p142
    %p144 = scmp.ne.s32.totalorder %s136, %s139
    %p145 = scmp.eq.s32.totalorder %s11, 0
    %p146 = por %p144, %p145
    %p147 = scmp.ne.s32.totalorder %s136, %s139
    %p148 = scmp.eq.s32.totalorder %s16, 1
    %p149 = por %p147, %p148
    %p150 = scmp.ne.s32.totalorder %s139, %s140
    %p151 = scmp.eq.s32.totalorder %s16, 0
    %p152 = por %p150, %p151
    %p153 = scmp.ne.s32.totalorder %s139, %s140
    %p154 = scmp.eq.s32.totalorder %s17, 1
    %p155 = por %p153, %p154
    %p157 = scmp.ne.s32.totalorder %s140, %s156
    %p158 = scmp.eq.s32.totalorder %s17, 0
    %p159 = por %p157, %p158
    %p160 = scmp.le.s32.totalorder 1, %s11
    %p161 = scmp.lt.s32.totalorder %s11, 3
    %p162 = pnand %p160, %p161
    %p163 = pneg %p162
    // Predicated region
    $region9: #{px_forward.5} parent=5 // pred_check
      _
    $region10: #{px_forward.5} parent=5 // pred_check_branch
      %165 = sbr.rel (%p162) target = $region12
    $region11: #{px_forward.5} parent=5 // pred_region
      %s166 = ssub.s32 %s11, 1
      // Predicated region
      $region13: #{px_forward.5} parent=11 // pred_check
        %p167 = pneg %p70
      $region14: #{px_forward.5} parent=11 // pred_check_branch
        %169 = sbr.rel (%p167) target = $region16
      $region15: #{px_forward.5} parent=11 // pred_region
        _
      $region16: #{px_forward.5} parent=11 // pred_fallthru
        _
    $region12: #{px_forward.5} parent=5 // pred_fallthru
      _
    %p170 = scmp.lt.s32.totalorder %s11, 2
    // Predicated region
    $region17: #{px_forward.5} parent=5 // pred_check
      %p171 = pneg %p170
    $region18: #{px_forward.5} parent=5 // pred_check_branch
      %173 = sbr.rel (%p171) target = $region20
    $region19: #{px_forward.5} parent=5 // pred_region
      // Predicated region
      $region21: #{px_forward.5} parent=19 // pred_check
        %p174 = pneg %p43
      $region22: #{px_forward.5} parent=19 // pred_check_branch
        %176 = sbr.rel (%p174) target = $region24
      $region23: #{px_forward.5} parent=19 // pred_region
        %p177 = scmp.lt.s32.totalorder %s18, 1
        %s178 = scalar_select %p177, %s18, 1
        %s179 = smul.addr %s178, 8
        %s180 = scalar_lea.vmem %s0, %s179
      $region24: #{px_forward.5} parent=19 // pred_fallthru
        _
      // Predicated region
      $region25: #{px_forward.5} parent=19 // pred_check
        %p181 = pneg %p90
      $region26: #{px_forward.5} parent=19 // pred_check_branch
        %183 = sbr.rel (%p181) target = $region28
      $region27: #{px_forward.5} parent=19 // pred_region
        %p184 = scmp.lt.s32.totalorder %s18, 1
        %s185 = scalar_select %p184, %s18, 1
        %s186 = smul.addr %s185, 4
        %s187 = scalar_lea.vmem %s2, %s186
      $region28: #{px_forward.5} parent=19 // pred_fallthru
        _
    $region20: #{px_forward.5} parent=5 // pred_fallthru
      _
    %p188 = scmp.le.s32.totalorder 1, %s11
    %p189 = scmp.lt.s32.totalorder %s11, 3
    %p190 = pnand %p188, %p189
    %p191 = pneg %p190
    // Predicated region
    $region29: #{px_forward.5} parent=5 // pred_check
      _
    $region30: #{px_forward.5} parent=5 // pred_check_branch
      %193 = sbr.rel (%p190) target = $region32
    $region31: #{px_forward.5} parent=5 // pred_region
      %s194 = ssub.s32 %s11, 1
      %p195 = scmp.lt.s32.totalorder %s20, 1
      %s196 = scalar_select %p195, %s20, 1
      %s197 = smul.addr %s196, 8
      %s198 = scalar_lea.vmem %s0, %s197
      %p199 = pneg %p49
      %p200 = pneg %p46
      %p201 = pneg %p70
      %p202 = pneg %p67
      %p203 = scmp.lt.s32.totalorder %s20, 1
      %s204 = scalar_select %p203, %s20, 1
      %s205 = smul.addr %s204, 4
      %s206 = scalar_lea.vmem %s2, %s205
      %p207 = pneg %p96
      %p208 = pneg %p93
      %p209 = pneg %p124
      %p210 = pneg %p121
      %p211 = scmp.lt.s32.totalorder %s20, 1
      %s212 = scalar_select %p211, %s20, 1
      %p213 = scmp.lt.s32.totalorder %s21, 0
      %s214 = scalar_select %p213, %s21, 0
      %s215 = smul.addr %s214, 4
      %s216 = smul.addr %s212, 4
      %s217 = sadd.s32 %s215, %s216
      %s218 = smul.addr %s217, 8
      %s219 = scalar_lea.vmem %s3, %s218
      %p220 = pneg %p152
      %p221 = pneg %p149
      %p222 = scmp.lt.s32.totalorder %s20, 1
      %s223 = scalar_select %p222, %s20, 1
      %p224 = scmp.lt.s32.totalorder %s21, 0
      %s225 = scalar_select %p224, %s21, 0
      %s226 = smul.addr %s225, 4
      %s227 = smul.addr %s223, 4
      %s228 = sadd.s32 %s226, %s227
      %s229 = smul.addr %s228, 2
      %s230 = scalar_lea.vmem %s4, %s229
      %p231 = scmp.lt.s32.totalorder %s20, 1
      %s232 = scalar_select %p231, %s20, 1
      %s233 = smul.addr %s232, 8
      %s234 = scalar_lea.vmem %s0, %s233
      %p235 = scmp.lt.s32.totalorder %s20, 1
      %s236 = scalar_select %p235, %s20, 1
      %s237 = smul.addr %s236, 4
      %s238 = scalar_lea.vmem %s2, %s237
      %p239 = scmp.lt.s32.totalorder %s20, 1
      %s240 = scalar_select %p239, %s20, 1
      %p241 = scmp.lt.s32.totalorder %s21, 0
      %s242 = scalar_select %p241, %s21, 0
      %s243 = smul.addr %s242, 4
      %s244 = smul.addr %s240, 4
      %s245 = sadd.s32 %s243, %s244
      %s246 = smul.addr %s245, 8
      %s247 = scalar_lea.vmem %s3, %s246
      %p248 = scmp.lt.s32.totalorder %s20, 1
      %s249 = scalar_select %p248, %s20, 1
      %p250 = scmp.lt.s32.totalorder %s21, 0
      %s251 = scalar_select %p250, %s21, 0
      %s252 = smul.addr %s251, 4
      %s253 = smul.addr %s249, 4
      %s254 = sadd.s32 %s252, %s253
      %s255 = smul.addr %s254, 2
      %s256 = scalar_lea.vmem %s4, %s255
      %s258 = smul.u32 %s21, 6
      %s259 = scalar_lea.vmem %s234, %s258
      %v260 = vld [vmem:[%s259] sm:$0x3f]
      %v261 = vld [vmem:[%s1] sm:$0xff]
      %v262 = vld [vmem:[%s1 + $0x8] sm:$0xff]
      %v263 = vpack.c.bf16 %v260, %v260
      %v266 = vcombine.high %v261, %v261
      %v267 = vcombine.high %v262, %v262
      %v270 = vpack.c.bf16 %v261, %v261
      %v271 = vpack.c.bf16 %v266, %v266
      %v272 = vpack.c.bf16 %v262, %v262
      %v273 = vpack.c.bf16 %v267, %v267
      %s274 = sadd.s32 %s258, 1
      %s275 = scalar_lea.vmem %s234, %s274
      %v276 = vld [vmem:[%s275] sm:$0x3f]
      %s277 = scalar_lea.vmem %s1, 16
      %v278 = vld [vmem:[%s277] sm:$0xff]
      %v279 = vld [vmem:[%s277 + $0x8] sm:$0xff]
      %v280 = vpack.c.bf16 %v276, %v276
      %v283 = vcombine.high %v278, %v278
      %v284 = vcombine.high %v279, %v279
      %v287 = vpack.c.bf16 %v278, %v278
      %v288 = vpack.c.bf16 %v283, %v283
      %v289 = vpack.c.bf16 %v279, %v279
      %v290 = vpack.c.bf16 %v284, %v284
      %vm291 = vcmask 31744
      %v293 = vsel %vm291, %v280, 0
      %vm295 = vcmask 1041408
      %v297 = vsel %vm295, %v287, 0
      %v300 = vsel %vm295, %v288, 0
      %v303 = vsel %vm295, %v289, 0
      %v306 = vsel %vm295, %v290, 0
      %308 = vmatprep.subr.bf16.mxu0 0
      %309 = vmatpush1.bf16.msra.mxu0 0
      %310 = vmatprep.subr.bf16.mxu0 0
      %311 = vmatpush1.bf16.msra.mxu0 0
      %312 = vmatprep.subr.bf16.mxu0 0
      %313 = vmatpush1.bf16.msra.mxu0 0
      %314 = vmatprep.subr.bf16.mxu0 0
      %315 = vmatpush1.bf16.msra.mxu0 0
      %316 = vmatprep.subr.bf16.mxu0 0
      %317 = vmatpush1.bf16.msra.mxu0 0
      %318 = vmatprep.subr.bf16.mxu0 0
      %319 = vmatpush1.bf16.msra.mxu0 0
      %320 = vmatprep.subr.bf16.mxu0 0
      %321 = vmatpush1.bf16.msra.mxu0 0
      %322 = vmatprep.subr.bf16.mxu0 %v300
      %323 = vmatpush1.bf16.msra.mxu0 %v297
      %324 = vmatprep.subr.bf16.mxu0 0
      %325 = vmatpush2.bf16.msra.mxu0 0
      %326 = vmatprep.subr.bf16.mxu0 0
      %327 = vmatpush2.bf16.msra.mxu0 0
      %328 = vmatprep.subr.bf16.mxu0 0
      %329 = vmatpush2.bf16.msra.mxu0 0
      %330 = vmatprep.subr.bf16.mxu0 0
      %331 = vmatpush2.bf16.msra.mxu0 0
      %332 = vmatprep.subr.bf16.mxu0 0
      %333 = vmatpush2.bf16.msra.mxu0 0
      %334 = vmatprep.subr.bf16.mxu0 0
      %335 = vmatpush2.bf16.msra.mxu0 0
      %336 = vmatprep.subr.bf16.mxu0 0
      %337 = vmatpush2.bf16.msra.mxu0 0
      %338 = vmatprep.subr.bf16.mxu0 0
      %339 = vmatpush2.bf16.msra.mxu0 0
      %340 = vmatprep.mubr.bf16.mxu0 0
      %341 = vmatmul.mubr.bf16.gmra.mxu0 %v293
      %v342 = vpop.f32.mrf.mxu0
      %v343 = vadd.f32 0.0, %v342
      %v344 = vpop.f32.mrf.mxu0
      %v345 = vadd.f32 0.0, %v344
      %v346 = vpop.f32.mrf.mxu0
      %v347 = vpop.f32.mrf.mxu0
      %348 = vdwg.mxu0
      %349 = vmatprep.subr.bf16.mxu0 0
      %350 = vmatpush1.bf16.msra.mxu0 0
      %351 = vmatprep.subr.bf16.mxu0 0
      %352 = vmatpush1.bf16.msra.mxu0 0
      %353 = vmatprep.subr.bf16.mxu0 0
      %354 = vmatpush1.bf16.msra.mxu0 0
      %355 = vmatprep.subr.bf16.mxu0 0
      %356 = vmatpush1.bf16.msra.mxu0 0
      %357 = vmatprep.subr.bf16.mxu0 0
      %358 = vmatpush1.bf16.msra.mxu0 0
      %359 = vmatprep.subr.bf16.mxu0 0
      %360 = vmatpush1.bf16.msra.mxu0 0
      %361 = vmatprep.subr.bf16.mxu0 0
      %362 = vmatpush1.bf16.msra.mxu0 0
      %363 = vmatprep.subr.bf16.mxu0 %v306
      %364 = vmatpush1.bf16.msra.mxu0 %v303
      %365 = vmatprep.subr.bf16.mxu0 0
      %366 = vmatpush2.bf16.msra.mxu0 0
      %367 = vmatprep.subr.bf16.mxu0 0
      %368 = vmatpush2.bf16.msra.mxu0 0
      %369 = vmatprep.subr.bf16.mxu0 0
      %370 = vmatpush2.bf16.msra.mxu0 0
      %371 = vmatprep.subr.bf16.mxu0 0
      %372 = vmatpush2.bf16.msra.mxu0 0
      %373 = vmatprep.subr.bf16.mxu0 0
      %374 = vmatpush2.bf16.msra.mxu0 0
      %375 = vmatprep.subr.bf16.mxu0 0
      %376 = vmatpush2.bf16.msra.mxu0 0
      %377 = vmatprep.subr.bf16.mxu0 0
      %378 = vmatpush2.bf16.msra.mxu0 0
      %379 = vmatprep.subr.bf16.mxu0 0
      %380 = vmatpush2.bf16.msra.mxu0 0
      %381 = vmatprep.mubr.bf16.mxu0 0
      %382 = vmatmul.mubr.bf16.gmra.mxu0 %v293
      %v383 = vpop.f32.mrf.mxu0
      %v384 = vadd.f32 0.0, %v383
      %v385 = vpop.f32.mrf.mxu0
      %v386 = vadd.f32 0.0, %v385
      %v387 = vpop.f32.mrf.mxu0
      %v388 = vpop.f32.mrf.mxu0
      %389 = vdwg.mxu0
      %v391 = vsel %vm291, %v263, 0
      %v394 = vsel %vm295, %v270, 0
      %v397 = vsel %vm295, %v271, 0
      %v400 = vsel %vm295, %v272, 0
      %v403 = vsel %vm295, %v273, 0
      %405 = vmatprep.subr.bf16.mxu0 0
      %406 = vmatpush1.bf16.msra.mxu0 0
      %407 = vmatprep.subr.bf16.mxu0 0
      %408 = vmatpush1.bf16.msra.mxu0 0
      %409 = vmatprep.subr.bf16.mxu0 0
      %410 = vmatpush1.bf16.msra.mxu0 0
      %411 = vmatprep.subr.bf16.mxu0 0
      %412 = vmatpush1.bf16.msra.mxu0 0
      %413 = vmatprep.subr.bf16.mxu0 0
      %414 = vmatpush1.bf16.msra.mxu0 0
      %415 = vmatprep.subr.bf16.mxu0 0
      %416 = vmatpush1.bf16.msra.mxu0 0
      %417 = vmatprep.subr.bf16.mxu0 0
      %418 = vmatpush1.bf16.msra.mxu0 0
      %419 = vmatprep.subr.bf16.mxu0 %v397
      %420 = vmatpush1.bf16.msra.mxu0 %v394
      %421 = vmatprep.subr.bf16.mxu0 0
      %422 = vmatpush2.bf16.msra.mxu0 0
      %423 = vmatprep.subr.bf16.mxu0 0
      %424 = vmatpush2.bf16.msra.mxu0 0
      %425 = vmatprep.subr.bf16.mxu0 0
      %426 = vmatpush2.bf16.msra.mxu0 0
      %427 = vmatprep.subr.bf16.mxu0 0
      %428 = vmatpush2.bf16.msra.mxu0 0
      %429 = vmatprep.subr.bf16.mxu0 0
      %430 = vmatpush2.bf16.msra.mxu0 0
      %431 = vmatprep.subr.bf16.mxu0 0
      %432 = vmatpush2.bf16.msra.mxu0 0
      %433 = vmatprep.subr.bf16.mxu0 0
      %434 = vmatpush2.bf16.msra.mxu0 0
      %435 = vmatprep.subr.bf16.mxu0 0
      %436 = vmatpush2.bf16.msra.mxu0 0
      %437 = vmatprep.mubr.bf16.mxu0 0
      %438 = vmatmul.mubr.bf16.gmra.mxu0 %v391
      %v439 = vpop.f32.mrf.mxu0
      %v440 = vadd.f32 %v343, %v439
      %v441 = vpop.f32.mrf.mxu0
      %v442 = vadd.f32 %v345, %v441
      %v443 = vpop.f32.mrf.mxu0
      %v444 = vpop.f32.mrf.mxu0
      %445 = vdwg.mxu0
      %446 = vmatprep.subr.bf16.mxu0 0
      %447 = vmatpush1.bf16.msra.mxu0 0
      %448 = vmatprep.subr.bf16.mxu0 0
      %449 = vmatpush1.bf16.msra.mxu0 0
      %450 = vmatprep.subr.bf16.mxu0 0
      %451 = vmatpush1.bf16.msra.mxu0 0
      %452 = vmatprep.subr.bf16.mxu0 0
      %453 = vmatpush1.bf16.msra.mxu0 0
      %454 = vmatprep.subr.bf16.mxu0 0
      %455 = vmatpush1.bf16.msra.mxu0 0
      %456 = vmatprep.subr.bf16.mxu0 0
      %457 = vmatpush1.bf16.msra.mxu0 0
      %458 = vmatprep.subr.bf16.mxu0 0
      %459 = vmatpush1.bf16.msra.mxu0 0
      %460 = vmatprep.subr.bf16.mxu0 %v403
      %461 = vmatpush1.bf16.msra.mxu0 %v400
      %462 = vmatprep.subr.bf16.mxu0 0
      %463 = vmatpush2.bf16.msra.mxu0 0
      %464 = vmatprep.subr.bf16.mxu0 0
      %465 = vmatpush2.bf16.msra.mxu0 0
      %466 = vmatprep.subr.bf16.mxu0 0
      %467 = vmatpush2.bf16.msra.mxu0 0
      %468 = vmatprep.subr.bf16.mxu0 0
      %469 = vmatpush2.bf16.msra.mxu0 0
      %470 = vmatprep.subr.bf16.mxu0 0
      %471 = vmatpush2.bf16.msra.mxu0 0
      %472 = vmatprep.subr.bf16.mxu0 0
      %473 = vmatpush2.bf16.msra.mxu0 0
      %474 = vmatprep.subr.bf16.mxu0 0
      %475 = vmatpush2.bf16.msra.mxu0 0
      %476 = vmatprep.subr.bf16.mxu0 0
      %477 = vmatpush2.bf16.msra.mxu0 0
      %478 = vmatprep.mubr.bf16.mxu0 0
      %479 = vmatmul.mubr.bf16.gmra.mxu0 %v391
      %v480 = vpop.f32.mrf.mxu0
      %v481 = vadd.f32 %v384, %v480
      %v482 = vpop.f32.mrf.mxu0
      %v483 = vadd.f32 %v386, %v482
      %v484 = vpop.f32.mrf.mxu0
      %v485 = vpop.f32.mrf.mxu0
      %486 = vdwg.mxu0
      %s487 = sadd.s32 %s258, 2
      %s488 = scalar_lea.vmem %s234, %s487
      %v489 = vld [vmem:[%s488] sm:$0x3f]
      %s490 = scalar_lea.vmem %s1, 32
      %v491 = vld [vmem:[%s490] sm:$0xff]
      %v492 = vld [vmem:[%s490 + $0x8] sm:$0xff]
      %v493 = vpack.c.bf16 %v489, %v489
      %v496 = vcombine.high %v491, %v491
      %v497 = vcombine.high %v492, %v492
      %v500 = vpack.c.bf16 %v491, %v491
      %v501 = vpack.c.bf16 %v496, %v496
      %v502 = vpack.c.bf16 %v492, %v492
      %v503 = vpack.c.bf16 %v497, %v497
      %v505 = vsel %vm291, %v493, 0
      %v508 = vsel %vm295, %v500, 0
      %v511 = vsel %vm295, %v501, 0
      %v514 = vsel %vm295, %v502, 0
      %v517 = vsel %vm295, %v503, 0
      %519 = vmatprep.subr.bf16.mxu0 0
      %520 = vmatpush1.bf16.msra.mxu0 0
      %521 = vmatprep.subr.bf16.mxu0 0
      %522 = vmatpush1.bf16.msra.mxu0 0
      %523 = vmatprep.subr.bf16.mxu0 0
      %524 = vmatpush1.bf16.msra.mxu0 0
      %525 = vmatprep.subr.bf16.mxu0 0
      %526 = vmatpush1.bf16.msra.mxu0 0
      %527 = vmatprep.subr.bf16.mxu0 0
      %528 = vmatpush1.bf16.msra.mxu0 0
      %529 = vmatprep.subr.bf16.mxu0 0
      %530 = vmatpush1.bf16.msra.mxu0 0
      %531 = vmatprep.subr.bf16.mxu0 0
      %532 = vmatpush1.bf16.msra.mxu0 0
      %533 = vmatprep.subr.bf16.mxu0 %v511
      %534 = vmatpush1.bf16.msra.mxu0 %v508
      %535 = vmatprep.subr.bf16.mxu0 0
      %536 = vmatpush2.bf16.msra.mxu0 0
      %537 = vmatprep.subr.bf16.mxu0 0
      %538 = vmatpush2.bf16.msra.mxu0 0
      %539 = vmatprep.subr.bf16.mxu0 0
      %540 = vmatpush2.bf16.msra.mxu0 0
      %541 = vmatprep.subr.bf16.mxu0 0
      %542 = vmatpush2.bf16.msra.mxu0 0
      %543 = vmatprep.subr.bf16.mxu0 0
      %544 = vmatpush2.bf16.msra.mxu0 0
      %545 = vmatprep.subr.bf16.mxu0 0
      %546 = vmatpush2.bf16.msra.mxu0 0
      %547 = vmatprep.subr.bf16.mxu0 0
      %548 = vmatpush2.bf16.msra.mxu0 0
      %549 = vmatprep.subr.bf16.mxu0 0
      %550 = vmatpush2.bf16.msra.mxu0 0
      %551 = vmatprep.mubr.bf16.mxu0 0
      %552 = vmatmul.mubr.bf16.gmra.mxu0 %v505
      %v553 = vpop.f32.mrf.mxu0
      %v554 = vadd.f32 0.0, %v553
      %v555 = vpop.f32.mrf.mxu0
      %v556 = vadd.f32 0.0, %v555
      %v557 = vpop.f32.mrf.mxu0
      %v558 = vpop.f32.mrf.mxu0
      %559 = vdwg.mxu0
      %560 = vmatprep.subr.bf16.mxu0 0
      %561 = vmatpush1.bf16.msra.mxu0 0
      %562 = vmatprep.subr.bf16.mxu0 0
      %563 = vmatpush1.bf16.msra.mxu0 0
      %564 = vmatprep.subr.bf16.mxu0 0
      %565 = vmatpush1.bf16.msra.mxu0 0
      %566 = vmatprep.subr.bf16.mxu0 0
      %567 = vmatpush1.bf16.msra.mxu0 0
      %568 = vmatprep.subr.bf16.mxu0 0
      %569 = vmatpush1.bf16.msra.mxu0 0
      %570 = vmatprep.subr.bf16.mxu0 0
      %571 = vmatpush1.bf16.msra.mxu0 0
      %572 = vmatprep.subr.bf16.mxu0 0
      %573 = vmatpush1.bf16.msra.mxu0 0
      %574 = vmatprep.subr.bf16.mxu0 %v517
      %575 = vmatpush1.bf16.msra.mxu0 %v514
      %576 = vmatprep.subr.bf16.mxu0 0
      %577 = vmatpush2.bf16.msra.mxu0 0
      %578 = vmatprep.subr.bf16.mxu0 0
      %579 = vmatpush2.bf16.msra.mxu0 0
      %580 = vmatprep.subr.bf16.mxu0 0
      %581 = vmatpush2.bf16.msra.mxu0 0
      %582 = vmatprep.subr.bf16.mxu0 0
      %583 = vmatpush2.bf16.msra.mxu0 0
      %584 = vmatprep.subr.bf16.mxu0 0
      %585 = vmatpush2.bf16.msra.mxu0 0
      %586 = vmatprep.subr.bf16.mxu0 0
      %587 = vmatpush2.bf16.msra.mxu0 0
      %588 = vmatprep.subr.bf16.mxu0 0
      %589 = vmatpush2.bf16.msra.mxu0 0
      %590 = vmatprep.subr.bf16.mxu0 0
      %591 = vmatpush2.bf16.msra.mxu0 0
      %592 = vmatprep.mubr.bf16.mxu0 0
      %593 = vmatmul.mubr.bf16.gmra.mxu0 %v505
      %v594 = vpop.f32.mrf.mxu0
      %v595 = vadd.f32 0.0, %v594
      %v596 = vpop.f32.mrf.mxu0
      %v597 = vadd.f32 0.0, %v596
      %v598 = vpop.f32.mrf.mxu0
      %v599 = vpop.f32.mrf.mxu0
      %600 = vdwg.mxu0
      %v601 = vadd.f32 %v440, %v554
      %v602 = vadd.f32 %v442, %v556
      %v603 = vadd.f32 %v481, %v595
      %v604 = vadd.f32 %v483, %v597
      %v605 = vld [vmem:[%s238] sm:$0xf]
      %v607 = vlaneseq
      %v608 = vshrl.u32 %v607, 7
      %v609 = vsub.s32 0, %v608
      %v610 = vrot.slane %v605, %v609
      %v611 = vlaneseq
      %v612 = vshrl.u32 %v611, 7
      %v613 = vsub.s32 1, %v612
      %v614 = vrot.slane %v605, %v613
      %v615 = vlaneseq
      %v616 = vshrl.u32 %v615, 7
      %v617 = vsub.s32 2, %v616
      %v618 = vrot.slane %v605, %v617
      %v619 = vlaneseq
      %v620 = vshrl.u32 %v619, 7
      %v621 = vsub.s32 3, %v620
      %v622 = vrot.slane %v605, %v621
      %v627 = vadd.f32 %v601, %v610
      %v628 = vadd.f32 %v602, %v614
      %v629 = vadd.f32 %v603, %v618
      %v630 = vadd.f32 %v604, %v622
      %631 = vst [vmem:[%s247] sm:$0x3f] %v627
      %632 = vst [vmem:[%s247 + $0x8] sm:$0x3f] %v628
      %633 = vst [vmem:[%s247 + $0x10] sm:$0x3f] %v629
      %634 = vst [vmem:[%s247 + $0x18] sm:$0x3f] %v630
      %v635 = vlaneseq
      %v636 = vshrl.u32 %v635, 7
      %v637 = vstv %s258
      %v638 = vadd.s32 %v636, %v637
      %vm639 = vcmp.lt.s32.totalorder %v638, 6
      %v640 = vsel %vm639, 1, 0
      %vm641 = vcmp.eq.s32.totalorder %v640, 1
      %v642 = vsel %vm641, %v627, 0.0
      %v643 = vsel %vm641, %v628, 0.0
      %v644 = vsel %vm641, %v629, 0.0
      %v645 = vsel %vm641, %v630, 0.0
      %vm646 = vcmask 1045504
      %v647 = vsel %vm646, %v642, 0.0
      %v648 = vrot.slane %v647, 4
      %v649 = vadd.f32 %v647, %v648
      %v650 = vrot.slane %v649, 2
      %v651 = vadd.f32 %v649, %v650
      %v652 = vrot.slane %v651, 1
      %v653 = vadd.f32 %v651, %v652
      %v654 = vsel %vm646, %v643, 0.0
      %v655 = vrot.slane %v654, 4
      %v656 = vadd.f32 %v654, %v655
      %v657 = vrot.slane %v656, 2
      %v658 = vadd.f32 %v656, %v657
      %v659 = vrot.slane %v658, 1
      %v660 = vadd.f32 %v658, %v659
      %v661 = vsel %vm646, %v644, 0.0
      %v662 = vrot.slane %v661, 4
      %v663 = vadd.f32 %v661, %v662
      %v664 = vrot.slane %v663, 2
      %v665 = vadd.f32 %v663, %v664
      %v666 = vrot.slane %v665, 1
      %v667 = vadd.f32 %v665, %v666
      %v668 = vsel %vm646, %v645, 0.0
      %v669 = vrot.slane %v668, 4
      %v670 = vadd.f32 %v668, %v669
      %v671 = vrot.slane %v670, 2
      %v672 = vadd.f32 %v670, %v671
      %v673 = vrot.slane %v672, 1
      %v674 = vadd.f32 %v672, %v673
      %v679 = vcombine.low %v653, %v660
      %v680 = vcombine.low %v667, %v674
      %v682 = vunpack.c.l.s4 1966171168
      %v683 = vunpack.c.0.s8 %v682
      %v684 = vlaneseq
      %v685 = vshrl.u32 %v684, 7
      %v686 = vsub.s32 %v683, %v685
      %v687 = vrot.slane %v679, %v686
      %v689 = vunpack.c.l.s4 1966171168
      %v690 = vunpack.c.0.s8 %v689
      %v691 = vlaneseq
      %v692 = vshrl.u32 %v691, 7
      %v693 = vsub.s32 %v690, %v692
      %v694 = vrot.slane %v680, %v693
      %v695 = vcombine.low %v687, %v694
      %v697 = vunpack.c.l.s4 1966171168
      %v698 = vunpack.c.0.s8 %v697
      %v699 = vlaneseq
      %v700 = vshrl.u32 %v699, 7
      %v701 = vsub.s32 %v698, %v700
      %v702 = vrot.slane %v695, %v701
      %v704 = vlaneseq
      %vm705 = vcmp.ge.s32.totalorder %v704, 0
      %vm706 = vcmp.lt.s32.totalorder %v704, 512
      %vm707 = vmand %vm705, %vm706
      %708 = vst.msk [vmem:[%s256] ss:$2 sm:$0xf] %vm707, %v702
      %v709 = vmul.f32 %v642, %v642
      %v710 = vmul.f32 %v643, %v643
      %v711 = vmul.f32 %v644, %v644
      %v712 = vmul.f32 %v645, %v645
      %v713 = vsel %vm646, %v709, 0.0
      %v714 = vrot.slane %v713, 4
      %v715 = vadd.f32 %v713, %v714
      %v716 = vrot.slane %v715, 2
      %v717 = vadd.f32 %v715, %v716
      %v718 = vrot.slane %v717, 1
      %v719 = vadd.f32 %v717, %v718
      %v720 = vsel %vm646, %v710, 0.0
      %v721 = vrot.slane %v720, 4
      %v722 = vadd.f32 %v720, %v721
      %v723 = vrot.slane %v722, 2
      %v724 = vadd.f32 %v722, %v723
      %v725 = vrot.slane %v724, 1
      %v726 = vadd.f32 %v724, %v725
      %v727 = vsel %vm646, %v711, 0.0
      %v728 = vrot.slane %v727, 4
      %v729 = vadd.f32 %v727, %v728
      %v730 = vrot.slane %v729, 2
      %v731 = vadd.f32 %v729, %v730
      %v732 = vrot.slane %v731, 1
      %v733 = vadd.f32 %v731, %v732
      %v734 = vsel %vm646, %v712, 0.0
      %v735 = vrot.slane %v734, 4
      %v736 = vadd.f32 %v734, %v735
      %v737 = vrot.slane %v736, 2
      %v738 = vadd.f32 %v736, %v737
      %v739 = vrot.slane %v738, 1
      %v740 = vadd.f32 %v738, %v739
      %v745 = vcombine.low %v719, %v726
      %v746 = vcombine.low %v733, %v740
      %v748 = vunpack.c.l.s4 1966171168
      %v749 = vunpack.c.0.s8 %v748
      %v750 = vlaneseq
      %v751 = vshrl.u32 %v750, 7
      %v752 = vsub.s32 %v749, %v751
      %v753 = vrot.slane %v745, %v752
      %v755 = vunpack.c.l.s4 1966171168
      %v756 = vunpack.c.0.s8 %v755
      %v757 = vlaneseq
      %v758 = vshrl.u32 %v757, 7
      %v759 = vsub.s32 %v756, %v758
      %v760 = vrot.slane %v746, %v759
      %v761 = vcombine.low %v753, %v760
      %v763 = vunpack.c.l.s4 1966171168
      %v764 = vunpack.c.0.s8 %v763
      %v765 = vlaneseq
      %v766 = vshrl.u32 %v765, 7
      %v767 = vsub.s32 %v764, %v766
      %v768 = vrot.slane %v761, %v767
      %s770 = scalar_lea.vmem %s256, 1
      %771 = vst.msk [vmem:[%s770] ss:$2 sm:$0xf] %vm707, %v768
      %p772 = scmp.lt.s32.totalorder %s20, 1
      %s773 = scalar_select %p772, %s20, 1
      %p774 = scmp.lt.s32.totalorder %s21, 0
      %s775 = scalar_select %p774, %s21, 0
      %s776 = smul.addr %s775, 4
      %s777 = smul.addr %s773, 4
      %s778 = sadd.s32 %s776, %s777
      %s779 = smul.addr %s778, 8
      %s780 = scalar_lea.vmem %s3, %s779
      %p781 = scmp.lt.s32.totalorder %s20, 1
      %s782 = scalar_select %p781, %s20, 1
      %p783 = scmp.lt.s32.totalorder %s21, 0
      %s784 = scalar_select %p783, %s21, 0
      %s785 = smul.addr %s784, 4
      %s786 = smul.addr %s782, 4
      %s787 = sadd.s32 %s785, %s786
      %s788 = smul.addr %s787, 2
      %s789 = scalar_lea.vmem %s4, %s788
      // Predicated region
      $region33: #{px_forward.5} parent=31 // pred_check
        %p790 = pneg %p121
      $region34: #{px_forward.5} parent=31 // pred_check_branch
        %792 = sbr.rel (%p790) target = $region36
      $region35: #{px_forward.5} parent=31 // pred_region
        _
      $region36: #{px_forward.5} parent=31 // pred_fallthru
        _
      // Predicated region
      $region37: #{px_forward.5} parent=31 // pred_check
        %p793 = pneg %p149
      $region38: #{px_forward.5} parent=31 // pred_check_branch
        %795 = sbr.rel (%p793) target = $region40
      $region39: #{px_forward.5} parent=31 // pred_region
        _
      $region40: #{px_forward.5} parent=31 // pred_fallthru
        _
    $region32: #{px_forward.5} parent=5 // pred_fallthru
      _
    %p796 = scmp.le.s32.totalorder 2, %s11
    // Predicated region
    $region41: #{px_forward.5} parent=5 // pred_check
      %p797 = pneg %p796
    $region42: #{px_forward.5} parent=5 // pred_check_branch
      %799 = sbr.rel (%p797) target = $region44
    $region43: #{px_forward.5} parent=5 // pred_region
      %s800 = ssub.s32 %s11, 2
      // Predicated region
      $region45: #{px_forward.5} parent=43 // pred_check
        %p801 = pneg %p127
      $region46: #{px_forward.5} parent=43 // pred_check_branch
        %803 = sbr.rel (%p801) target = $region48
      $region47: #{px_forward.5} parent=43 // pred_region
        %p804 = scmp.lt.s32.totalorder %s22, 1
        %s805 = scalar_select %p804, %s22, 1
        %p806 = scmp.lt.s32.totalorder %s23, 0
        %s807 = scalar_select %p806, %s23, 0
        %s808 = smul.addr %s807, 4
        %s809 = smul.addr %s805, 4
        %s810 = sadd.s32 %s808, %s809
        %s811 = smul.addr %s810, 8
        %s812 = scalar_lea.vmem %s3, %s811
      $region48: #{px_forward.5} parent=43 // pred_fallthru
        _
      // Predicated region
      $region49: #{px_forward.5} parent=43 // pred_check
        %p813 = pneg %p155
      $region50: #{px_forward.5} parent=43 // pred_check_branch
        %815 = sbr.rel (%p813) target = $region52
      $region51: #{px_forward.5} parent=43 // pred_region
        %p816 = scmp.lt.s32.totalorder %s22, 1
        %s817 = scalar_select %p816, %s22, 1
        %p818 = scmp.lt.s32.totalorder %s23, 0
        %s819 = scalar_select %p818, %s23, 0
        %s820 = smul.addr %s819, 4
        %s821 = smul.addr %s817, 4
        %s822 = sadd.s32 %s820, %s821
        %s823 = smul.addr %s822, 2
        %s824 = scalar_lea.vmem %s4, %s823
      $region52: #{px_forward.5} parent=43 // pred_fallthru
        _
    $region44: #{px_forward.5} parent=5 // pred_fallthru
      _
  $region6: #{px_forward.5} parent=0 // loop_footer
    %s15 = sadd.s32 1, %s11
  $region7: #{px_forward.5} parent=0 // loop_footer_branch
    %10 = sbr.rel target = $region3
  $region8: #{px_forward.5} parent=0 // loop_exit
    _

// kernel: px_forward.6
$region0: #{px_forward.6}
  #allocation0 [shape = 'u32[]', space=smem, size = 0x4, offset = 0x4, fixed_abs, tag = 'smem constant byte address 0x4 - core index']
  #allocation1 [shape = 'u32[144,128]{1,0:T(1,128)}', space=vmem, size = 0x12000, scoped, tag = 'internal scratch']
  %s0 = inlined_call_operand.vmem [shape: f32[2,6,512], index: 0, kind: input, shape index: {}]
  %s1 = inlined_call_operand.vmem [shape: f32[1,512], index: 1, kind: input, shape index: {}]
  %s2 = inlined_call_operand.vmem [shape: f32[1,512], index: 2, kind: input, shape index: {}]
  %s3 = inlined_call_operand.vmem [shape: bf16[512,512], index: 3, kind: input, shape index: {}]
  %s4 = inlined_call_operand.vmem [shape: f32[2,1,512], index: 4, kind: input, shape index: {}]
  %s5 = inlined_call_operand.vmem [shape: f32[2,6,512], index: 5, kind: output, shape index: {0}]
  %s6 = inlined_call_operand.vmem [shape: f32[2,1,2,512], index: 6, kind: output, shape index: {1}]
  %7 = xla_tuple %s5, %s6
  %s8 = sld [smem:[#allocation0]]
  $region61: #{px_forward.6} parent=0
    _
  %s10 = ssub.s32 1, %s8
  %s11 = scalar_select 0, %s10, %s8
  loop: start=0, step=1, limit=4
  $region2: #{px_forward.6} parent=0 // loop_pre_header
    _
  $region3: #{px_forward.6} parent=0 // loop_header
    %s13 = sphi 0, %s17
    %p14 = scmp.ge.s32.totalorder %s13, 4
    %s20 = sphi 0, %s32
    %s21 = sphi 0, %s28
    %s22 = sphi 0, %s20
    %s23 = sphi 0, %s21
    %s24 = sphi 0, %s22
    %s25 = sphi 0, %s23
    %s37 = sphi 0, %s39
    %s40 = sphi 0, %s37
    %s41 = sphi 0, %s40
    %s57 = sphi 0, %s41
    %s61 = sphi 0, %s61
    %s63 = sphi 0, %s61
    %s64 = sphi 0, %s63
    %s78 = sphi 0, %s64
    %s82 = sphi 0, %s82
    %s84 = sphi 0, %s82
    %s85 = sphi 0, %s84
    %s99 = sphi 0, %s85
    %s103 = sphi 0, %s103
    %s105 = sphi 0, %s103
    %s106 = sphi 0, %s105
    %s120 = sphi 0, %s106
    %s126 = sphi 0, %s128
    %s129 = sphi 0, %s126
    %s130 = sphi 0, %s129
    %s146 = sphi 0, %s130
    %s154 = sphi 0, %s156
    %s157 = sphi 0, %s154
    %s158 = sphi 0, %s157
    %s174 = sphi 0, %s158
    %s182 = sphi 0, %s184
    %s185 = sphi 0, %s182
    %s186 = sphi 0, %s185
    %s202 = sphi 0, %s186
  $region4: #{px_forward.6} parent=0 // loop_header_branch
    %16 = sbr.rel (%p14) target = $region8
  $region5: #{px_forward.6} parent=0 // loop_body
    %s18 = ssub.s32 %s13, 1
    %s19 = ssub.s32 %s13, 2
    %s26 = sadd.s32 1, %s21
    %p27 = scmp.ge.s32.totalorder %s26, 1
    %s28 = scalar_select %p27, 0, %s26
    %s29 = sadd.s32 1, %s20
    %s30 = scalar_select %p27, %s29, %s20
    %p31 = scmp.ge.s32.totalorder %s30, 2
    %s32 = scalar_select %p31, 0, %s30
    %s33 = ssub.s32 %s20, %s32
    %s34 = ssub.s32 %s21, %s28
    %s35 = sor.u32 %s33, %s34
    %p36 = scmp.eq.s32.totalorder %s35, 0
    %s38 = sadd.s32 %s37, 1
    %s39 = scalar_select %p36, %s37, %s38
    %p42 = pneg %p36
    %p43 = scmp.eq.s32.totalorder %s13, 1
    %p44 = por %p42, %p43
    %p45 = scmp.ne.s32.totalorder %s37, %s40
    %p46 = scmp.eq.s32.totalorder %s13, 0
    %p47 = por %p45, %p46
    %p48 = scmp.ne.s32.totalorder %s37, %s40
    %p49 = scmp.eq.s32.totalorder %s18, 1
    %p50 = por %p48, %p49
    %p51 = scmp.ne.s32.totalorder %s40, %s41
    %p52 = scmp.eq.s32.totalorder %s18, 0
    %p53 = por %p51, %p52
    %p54 = scmp.ne.s32.totalorder %s40, %s41
    %p55 = scmp.eq.s32.totalorder %s19, 1
    %p56 = por %p54, %p55
    %p58 = scmp.ne.s32.totalorder %s41, %s57
    %p59 = scmp.eq.s32.totalorder %s19, 0
    %p60 = por %p58, %p59
    %s62 = sadd.s32 %s61, 1
    %p65 = scmp.eq.s32.totalorder %s13, 1
    %p66 = scmp.ne.s32.totalorder %s61, %s63
    %p67 = scmp.eq.s32.totalorder %s13, 0
    %p68 = por %p66, %p67
    %p69 = scmp.ne.s32.totalorder %s61, %s63
    %p70 = scmp.eq.s32.totalorder %s18, 1
    %p71 = por %p69, %p70
    %p72 = scmp.ne.s32.totalorder %s63, %s64
    %p73 = scmp.eq.s32.totalorder %s18, 0
    %p74 = por %p72, %p73
    %p75 = scmp.ne.s32.totalorder %s63, %s64
    %p76 = scmp.eq.s32.totalorder %s19, 1
    %p77 = por %p75, %p76
    %p79 = scmp.ne.s32.totalorder %s64, %s78
    %p80 = scmp.eq.s32.totalorder %s19, 0
    %p81 = por %p79, %p80
    %s83 = sadd.s32 %s82, 1
    %p86 = scmp.eq.s32.totalorder %s13, 1
    %p87 = scmp.ne.s32.totalorder %s82, %s84
    %p88 = scmp.eq.s32.totalorder %s13, 0
    %p89 = por %p87, %p88
    %p90 = scmp.ne.s32.totalorder %s82, %s84
    %p91 = scmp.eq.s32.totalorder %s18, 1
    %p92 = por %p90, %p91
    %p93 = scmp.ne.s32.totalorder %s84, %s85
    %p94 = scmp.eq.s32.totalorder %s18, 0
    %p95 = por %p93, %p94
    %p96 = scmp.ne.s32.totalorder %s84, %s85
    %p97 = scmp.eq.s32.totalorder %s19, 1
    %p98 = por %p96, %p97
    %p100 = scmp.ne.s32.totalorder %s85, %s99
    %p101 = scmp.eq.s32.totalorder %s19, 0
    %p102 = por %p100, %p101
    %s104 = sadd.s32 %s103, 1
    %p107 = scmp.eq.s32.totalorder %s13, 1
    %p108 = scmp.ne.s32.totalorder %s103, %s105
    %p109 = scmp.eq.s32.totalorder %s13, 0
    %p110 = por %p108, %p109
    %p111 = scmp.ne.s32.totalorder %s103, %s105
    %p112 = scmp.eq.s32.totalorder %s18, 1
    %p113 = por %p111, %p112
    %p114 = scmp.ne.s32.totalorder %s105, %s106
    %p115 = scmp.eq.s32.totalorder %s18, 0
    %p116 = por %p114, %p115
    %p117 = scmp.ne.s32.totalorder %s105, %s106
    %p118 = scmp.eq.s32.totalorder %s19, 1
    %p119 = por %p117, %p118
    %p121 = scmp.ne.s32.totalorder %s106, %s120
    %p122 = scmp.eq.s32.totalorder %s19, 0
    %p123 = por %p121, %p122
    %s124 = ssub.s32 %s20, %s32
    %p125 = scmp.eq.s32.totalorder %s124, 0
    %s127 = sadd.s32 %s126, 1
    %s128 = scalar_select %p125, %s126, %s127
    %p131 = pneg %p125
    %p132 = scmp.eq.s32.totalorder %s13, 1
    %p133 = por %p131, %p132
    %p134 = scmp.ne.s32.totalorder %s126, %s129
    %p135 = scmp.eq.s32.totalorder %s13, 0
    %p136 = por %p134, %p135
    %p137 = scmp.ne.s32.totalorder %s126, %s129
    %p138 = scmp.eq.s32.totalorder %s18, 1
    %p139 = por %p137, %p138
    %p140 = scmp.ne.s32.totalorder %s129, %s130
    %p141 = scmp.eq.s32.totalorder %s18, 0
    %p142 = por %p140, %p141
    %p143 = scmp.ne.s32.totalorder %s129, %s130
    %p144 = scmp.eq.s32.totalorder %s19, 1
    %p145 = por %p143, %p144
    %p147 = scmp.ne.s32.totalorder %s130, %s146
    %p148 = scmp.eq.s32.totalorder %s19, 0
    %p149 = por %p147, %p148
    %s150 = ssub.s32 %s20, %s32
    %s151 = ssub.s32 %s21, %s28
    %s152 = sor.u32 %s150, %s151
    %p153 = scmp.eq.s32.totalorder %s152, 0
    %s155 = sadd.s32 %s154, 1
    %s156 = scalar_select %p153, %s154, %s155
    %p159 = pneg %p153
    %p160 = scmp.eq.s32.totalorder %s13, 1
    %p161 = por %p159, %p160
    %p162 = scmp.ne.s32.totalorder %s154, %s157
    %p163 = scmp.eq.s32.totalorder %s13, 0
    %p164 = por %p162, %p163
    %p165 = scmp.ne.s32.totalorder %s154, %s157
    %p166 = scmp.eq.s32.totalorder %s18, 1
    %p167 = por %p165, %p166
    %p168 = scmp.ne.s32.totalorder %s157, %s158
    %p169 = scmp.eq.s32.totalorder %s18, 0
    %p170 = por %p168, %p169
    %p171 = scmp.ne.s32.totalorder %s157, %s158
    %p172 = scmp.eq.s32.totalorder %s19, 1
    %p173 = por %p171, %p172
    %p175 = scmp.ne.s32.totalorder %s158, %s174
    %p176 = scmp.eq.s32.totalorder %s19, 0
    %p177 = por %p175, %p176
    %s178 = ssub.s32 %s20, %s32
    %s179 = ssub.s32 %s21, %s28
    %s180 = sor.u32 %s178, %s179
    %p181 = scmp.eq.s32.totalorder %s180, 0
    %s183 = sadd.s32 %s182, 1
    %s184 = scalar_select %p181, %s182, %s183
    %p187 = pneg %p181
    %p188 = scmp.eq.s32.totalorder %s13, 1
    %p189 = por %p187, %p188
    %p190 = scmp.ne.s32.totalorder %s182, %s185
    %p191 = scmp.eq.s32.totalorder %s13, 0
    %p192 = por %p190, %p191
    %p193 = scmp.ne.s32.totalorder %s182, %s185
    %p194 = scmp.eq.s32.totalorder %s18, 1
    %p195 = por %p193, %p194
    %p196 = scmp.ne.s32.totalorder %s185, %s186
    %p197 = scmp.eq.s32.totalorder %s18, 0
    %p198 = por %p196, %p197
    %p199 = scmp.ne.s32.totalorder %s185, %s186
    %p200 = scmp.eq.s32.totalorder %s19, 1
    %p201 = por %p199, %p200
    %p203 = scmp.ne.s32.totalorder %s186, %s202
    %p204 = scmp.eq.s32.totalorder %s19, 0
    %p205 = por %p203, %p204
    %p206 = scmp.le.s32.totalorder 1, %s13
    %p207 = scmp.lt.s32.totalorder %s13, 3
    %p208 = pnand %p206, %p207
    %p209 = pneg %p208
    // Predicated region
    $region9: #{px_forward.6} parent=5 // pred_check
      _
    $region10: #{px_forward.6} parent=5 // pred_check_branch
      %211 = sbr.rel (%p208) target = $region12
    $region11: #{px_forward.6} parent=5 // pred_region
      %s212 = ssub.s32 %s13, 1
      // Predicated region
      $region13: #{px_forward.6} parent=11 // pred_check
        %p213 = pneg %p74
      $region14: #{px_forward.6} parent=11 // pred_check_branch
        %215 = sbr.rel (%p213) target = $region16
      $region15: #{px_forward.6} parent=11 // pred_region
        _
      $region16: #{px_forward.6} parent=11 // pred_fallthru
        _
      // Predicated region
      $region17: #{px_forward.6} parent=11 // pred_check
        %p216 = pneg %p95
      $region18: #{px_forward.6} parent=11 // pred_check_branch
        %218 = sbr.rel (%p216) target = $region20
      $region19: #{px_forward.6} parent=11 // pred_region
        _
      $region20: #{px_forward.6} parent=11 // pred_fallthru
        _
      // Predicated region
      $region21: #{px_forward.6} parent=11 // pred_check
        %p219 = pneg %p116
      $region22: #{px_forward.6} parent=11 // pred_check_branch
        %221 = sbr.rel (%p219) target = $region24
      $region23: #{px_forward.6} parent=11 // pred_region
        _
      $region24: #{px_forward.6} parent=11 // pred_fallthru
        _
    $region12: #{px_forward.6} parent=5 // pred_fallthru
      _
    %p222 = scmp.lt.s32.totalorder %s13, 2
    // Predicated region
    $region25: #{px_forward.6} parent=5 // pred_check
      %p223 = pneg %p222
    $region26: #{px_forward.6} parent=5 // pred_check_branch
      %225 = sbr.rel (%p223) target = $region28
    $region27: #{px_forward.6} parent=5 // pred_region
      // Predicated region
      $region29: #{px_forward.6} parent=27 // pred_check
        %p226 = pneg %p47
      $region30: #{px_forward.6} parent=27 // pred_check_branch
        %228 = sbr.rel (%p226) target = $region32
      $region31: #{px_forward.6} parent=27 // pred_region
        %p229 = scmp.lt.s32.totalorder %s20, 1
        %s230 = scalar_select %p229, %s20, 1
        %p231 = scmp.lt.s32.totalorder %s21, 0
        %s232 = scalar_select %p231, %s21, 0
        %s233 = smul.addr %s232, 4
        %s234 = smul.addr %s230, 4
        %s235 = sadd.s32 %s233, %s234
        %s236 = smul.addr %s235, 8
        %s237 = scalar_lea.vmem %s0, %s236
      $region32: #{px_forward.6} parent=27 // pred_fallthru
        _
      // Predicated region
      $region33: #{px_forward.6} parent=27 // pred_check
        %p238 = pneg %p136
      $region34: #{px_forward.6} parent=27 // pred_check_branch
        %240 = sbr.rel (%p238) target = $region36
      $region35: #{px_forward.6} parent=27 // pred_region
        %p241 = scmp.lt.s32.totalorder %s20, 1
        %s242 = scalar_select %p241, %s20, 1
        %s243 = smul.addr %s242, 4
        %s244 = scalar_lea.vmem %s4, %s243
      $region36: #{px_forward.6} parent=27 // pred_fallthru
        _
    $region28: #{px_forward.6} parent=5 // pred_fallthru
      _
    %p245 = scmp.le.s32.totalorder 1, %s13
    %p246 = scmp.lt.s32.totalorder %s13, 3
    %p247 = pnand %p245, %p246
    %p248 = pneg %p247
    // Predicated region
    $region37: #{px_forward.6} parent=5 // pred_check
      _
    $region38: #{px_forward.6} parent=5 // pred_check_branch
      %250 = sbr.rel (%p247) target = $region40
    $region39: #{px_forward.6} parent=5 // pred_region
      %s251 = ssub.s32 %s13, 1
      %p252 = scmp.lt.s32.totalorder %s22, 1
      %s253 = scalar_select %p252, %s22, 1
      %p254 = scmp.lt.s32.totalorder %s23, 0
      %s255 = scalar_select %p254, %s23, 0
      %s256 = smul.addr %s255, 4
      %s257 = smul.addr %s253, 4
      %s258 = sadd.s32 %s256, %s257
      %s259 = smul.addr %s258, 8
      %s260 = scalar_lea.vmem %s0, %s259
      %p261 = pneg %p53
      %p262 = pneg %p50
      %p263 = pneg %p74
      %p264 = pneg %p71
      %p265 = pneg %p95
      %p266 = pneg %p92
      %p267 = pneg %p116
      %p268 = pneg %p113
      %p269 = scmp.lt.s32.totalorder %s22, 1
      %s270 = scalar_select %p269, %s22, 1
      %s271 = smul.addr %s270, 4
      %s272 = scalar_lea.vmem %s4, %s271
      %p273 = pneg %p142
      %p274 = pneg %p139
      %p275 = pneg %p170
      %p276 = pneg %p167
      %p277 = scmp.lt.s32.totalorder %s22, 1
      %s278 = scalar_select %p277, %s22, 1
      %p279 = scmp.lt.s32.totalorder %s23, 0
      %s280 = scalar_select %p279, %s23, 0
      %s281 = smul.addr %s280, 4
      %s282 = smul.addr %s278, 4
      %s283 = sadd.s32 %s281, %s282
      %s284 = smul.addr %s283, 8
      %s285 = scalar_lea.vmem %s5, %s284
      %p286 = pneg %p198
      %p287 = pneg %p195
      %p288 = scmp.lt.s32.totalorder %s22, 1
      %s289 = scalar_select %p288, %s22, 1
      %p290 = scmp.lt.s32.totalorder %s23, 0
      %s291 = scalar_select %p290, %s23, 0
      %s292 = smul.addr %s291, 4
      %s293 = smul.addr %s289, 4
      %s294 = sadd.s32 %s292, %s293
      %s295 = smul.addr %s294, 2
      %s296 = scalar_lea.vmem %s6, %s295
      %p297 = scmp.lt.s32.totalorder %s22, 1
      %s298 = scalar_select %p297, %s22, 1
      %p299 = scmp.lt.s32.totalorder %s23, 0
      %s300 = scalar_select %p299, %s23, 0
      %s301 = smul.addr %s300, 4
      %s302 = smul.addr %s298, 4
      %s303 = sadd.s32 %s301, %s302
      %s304 = smul.addr %s303, 8
      %s305 = scalar_lea.vmem %s0, %s304
      %p306 = scmp.lt.s32.totalorder %s22, 1
      %s307 = scalar_select %p306, %s22, 1
      %s308 = smul.addr %s307, 4
      %s309 = scalar_lea.vmem %s4, %s308
      %p310 = scmp.lt.s32.totalorder %s22, 1
      %s311 = scalar_select %p310, %s22, 1
      %p312 = scmp.lt.s32.totalorder %s23, 0
      %s313 = scalar_select %p312, %s23, 0
      %s314 = smul.addr %s313, 4
      %s315 = smul.addr %s311, 4
      %s316 = sadd.s32 %s314, %s315
      %s317 = smul.addr %s316, 8
      %s318 = scalar_lea.vmem %s5, %s317
      %p319 = scmp.lt.s32.totalorder %s22, 1
      %s320 = scalar_select %p319, %s22, 1
      %p321 = scmp.lt.s32.totalorder %s23, 0
      %s322 = scalar_select %p321, %s23, 0
      %s323 = smul.addr %s322, 4
      %s324 = smul.addr %s320, 4
      %s325 = sadd.s32 %s323, %s324
      %s326 = smul.addr %s325, 2
      %s327 = scalar_lea.vmem %s6, %s326
      %v328 = vld [vmem:[%s305] sm:$0x3f]
      %v329 = vld [vmem:[%s305 + $0x8] sm:$0x3f]
      %v330 = vld [vmem:[%s305 + $0x10] sm:$0x3f]
      %v331 = vld [vmem:[%s305 + $0x18] sm:$0x3f]
      %v332 = vld [vmem:[%s1] sm:$0xf]
      %v334 = vlaneseq
      %v335 = vshrl.u32 %v334, 7
      %v336 = vsub.s32 0, %v335
      %v337 = vrot.slane %v332, %v336
      %v338 = vlaneseq
      %v339 = vshrl.u32 %v338, 7
      %v340 = vsub.s32 1, %v339
      %v341 = vrot.slane %v332, %v340
      %v342 = vlaneseq
      %v343 = vshrl.u32 %v342, 7
      %v344 = vsub.s32 2, %v343
      %v345 = vrot.slane %v332, %v344
      %v346 = vlaneseq
      %v347 = vshrl.u32 %v346, 7
      %v348 = vsub.s32 3, %v347
      %v349 = vrot.slane %v332, %v348
      %v354 = vmul.f32 %v328, %v337
      %v355 = vmul.f32 %v329, %v341
      %v356 = vmul.f32 %v330, %v345
      %v357 = vmul.f32 %v331, %v349
      %v358 = vld [vmem:[%s2] sm:$0xf]
      %v360 = vlaneseq
      %v361 = vshrl.u32 %v360, 7
      %v362 = vsub.s32 0, %v361
      %v363 = vrot.slane %v358, %v362
      %v364 = vlaneseq
      %v365 = vshrl.u32 %v364, 7
      %v366 = vsub.s32 1, %v365
      %v367 = vrot.slane %v358, %v366
      %v368 = vlaneseq
      %v369 = vshrl.u32 %v368, 7
      %v370 = vsub.s32 2, %v369
      %v371 = vrot.slane %v358, %v370
      %v372 = vlaneseq
      %v373 = vshrl.u32 %v372, 7
      %v374 = vsub.s32 3, %v373
      %v375 = vrot.slane %v358, %v374
      %v380 = vadd.f32 %v354, %v363
      %v381 = vadd.f32 %v355, %v367
      %v382 = vadd.f32 %v356, %v371
      %v383 = vadd.f32 %v357, %v375
      %v384 = vmax.f32 %v380, 0.0
      %v385 = vmax.f32 %v381, 0.0
      %v386 = vmax.f32 %v382, 0.0
      %v387 = vmax.f32 %v383, 0.0
      %v388 = vld [vmem:[%s3] sm:$0xff]
      %v389 = vld [vmem:[%s3 + $0x8] sm:$0xff]
      %v390 = vld [vmem:[%s3 + $0x10] sm:$0xff]
      %v391 = vld [vmem:[%s3 + $0x18] sm:$0xff]
      %v392 = vld [vmem:[%s3 + $0x20] sm:$0xff]
      %v393 = vld [vmem:[%s3 + $0x28] sm:$0xff]
      %v394 = vld [vmem:[%s3 + $0x30] sm:$0xff]
      %v395 = vld [vmem:[%s3 + $0x38] sm:$0xff]
      %v396 = vld [vmem:[%s3 + $0x40] sm:$0xff]
      %v397 = vld [vmem:[%s3 + $0x48] sm:$0xff]
      %v398 = vld [vmem:[%s3 + $0x50] sm:$0xff]
      %v399 = vld [vmem:[%s3 + $0x58] sm:$0xff]
      %v400 = vld [vmem:[%s3 + $0x60] sm:$0xff]
      %v401 = vld [vmem:[%s3 + $0x68] sm:$0xff]
      %v402 = vld [vmem:[%s3 + $0x70] sm:$0xff]
      %v403 = vld [vmem:[%s3 + $0x78] sm:$0xff]
      %v404 = vld [vmem:[%s3 + $0x80] sm:$0xff]
      %v405 = vld [vmem:[%s3 + $0x88] sm:$0xff]
      %v406 = vld [vmem:[%s3 + $0x90] sm:$0xff]
      %v407 = vld [vmem:[%s3 + $0x98] sm:$0xff]
      %v408 = vld [vmem:[%s3 + $0xa0] sm:$0xff]
      %v409 = vld [vmem:[%s3 + $0xa8] sm:$0xff]
      %v410 = vld [vmem:[%s3 + $0xb0] sm:$0xff]
      %v411 = vld [vmem:[%s3 + $0xb8] sm:$0xff]
      %v412 = vld [vmem:[%s3 + $0xc0] sm:$0xff]
      %v413 = vld [vmem:[%s3 + $0xc8] sm:$0xff]
      %v414 = vld [vmem:[%s3 + $0xd0] sm:$0xff]
      %v415 = vld [vmem:[%s3 + $0xd8] sm:$0xff]
      %v416 = vld [vmem:[%s3 + $0xe0] sm:$0xff]
      %v417 = vld [vmem:[%s3 + $0xe8] sm:$0xff]
      %v418 = vld [vmem:[%s3 + $0xf0] sm:$0xff]
      %v419 = vld [vmem:[%s3 + $0xf8] sm:$0xff]
      %v420 = vld [vmem:[%s3 + $0x100] sm:$0xff]
      %v421 = vld [vmem:[%s3 + $0x108] sm:$0xff]
      %v422 = vld [vmem:[%s3 + $0x110] sm:$0xff]
      %v423 = vld [vmem:[%s3 + $0x118] sm:$0xff]
      %v424 = vld [vmem:[%s3 + $0x120] sm:$0xff]
      %v425 = vld [vmem:[%s3 + $0x128] sm:$0xff]
      %v426 = vld [vmem:[%s3 + $0x130] sm:$0xff]
      %v427 = vld [vmem:[%s3 + $0x138] sm:$0xff]
      %v428 = vld [vmem:[%s3 + $0x140] sm:$0xff]
      %v429 = vld [vmem:[%s3 + $0x148] sm:$0xff]
      %v430 = vld [vmem:[%s3 + $0x150] sm:$0xff]
      %v431 = vld [vmem:[%s3 + $0x158] sm:$0xff]
      %v432 = vld [vmem:[%s3 + $0x160] sm:$0xff]
      %v433 = vld [vmem:[%s3 + $0x168] sm:$0xff]
      %v434 = vld [vmem:[%s3 + $0x170] sm:$0xff]
      %v435 = vld [vmem:[%s3 + $0x178] sm:$0xff]
      %v436 = vld [vmem:[%s3 + $0x180] sm:$0xff]
      %v437 = vld [vmem:[%s3 + $0x188] sm:$0xff]
      %v438 = vld [vmem:[%s3 + $0x190] sm:$0xff]
      %v439 = vld [vmem:[%s3 + $0x198] sm:$0xff]
      %v440 = vld [vmem:[%s3 + $0x1a0] sm:$0xff]
      %v441 = vld [vmem:[%s3 + $0x1a8] sm:$0xff]
      %v442 = vld [vmem:[%s3 + $0x1b0] sm:$0xff]
      %v443 = vld [vmem:[%s3 + $0x1b8] sm:$0xff]
      %v444 = vld [vmem:[%s3 + $0x1c0] sm:$0xff]
      %v445 = vld [vmem:[%s3 + $0x1c8] sm:$0xff]
      %v446 = vld [vmem:[%s3 + $0x1d0] sm:$0xff]
      %v447 = vld [vmem:[%s3 + $0x1d8] sm:$0xff]
      %v448 = vld [vmem:[%s3 + $0x1e0] sm:$0xff]
      %v449 = vld [vmem:[%s3 + $0x1e8] sm:$0xff]
      %v450 = vld [vmem:[%s3 + $0x1f0] sm:$0xff]
      %v451 = vld [vmem:[%s3 + $0x1f8] sm:$0xff]
      %v452 = vld [vmem:[%s3 + $0x200] sm:$0xff]
      %v453 = vld [vmem:[%s3 + $0x208] sm:$0xff]
      %v454 = vld [vmem:[%s3 + $0x210] sm:$0xff]
      %v455 = vld [vmem:[%s3 + $0x218] sm:$0xff]
      %v456 = vld [vmem:[%s3 + $0x220] sm:$0xff]
      %v457 = vld [vmem:[%s3 + $0x228] sm:$0xff]
      %v458 = vld [vmem:[%s3 + $0x230] sm:$0xff]
      %v459 = vld [vmem:[%s3 + $0x238] sm:$0xff]
      %v460 = vld [vmem:[%s3 + $0x240] sm:$0xff]
      %v461 = vld [vmem:[%s3 + $0x248] sm:$0xff]
      %v462 = vld [vmem:[%s3 + $0x250] sm:$0xff]
      %v463 = vld [vmem:[%s3 + $0x258] sm:$0xff]
      %v464 = vld [vmem:[%s3 + $0x260] sm:$0xff]
      %v465 = vld [vmem:[%s3 + $0x268] sm:$0xff]
      %v466 = vld [vmem:[%s3 + $0x270] sm:$0xff]
      %v467 = vld [vmem:[%s3 + $0x278] sm:$0xff]
      %v468 = vld [vmem:[%s3 + $0x280] sm:$0xff]
      %v469 = vld [vmem:[%s3 + $0x288] sm:$0xff]
      %v470 = vld [vmem:[%s3 + $0x290] sm:$0xff]
      %v471 = vld [vmem:[%s3 + $0x298] sm:$0xff]
      %v472 = vld [vmem:[%s3 + $0x2a0] sm:$0xff]
      %v473 = vld [vmem:[%s3 + $0x2a8] sm:$0xff]
      %v474 = vld [vmem:[%s3 + $0x2b0] sm:$0xff]
      %v475 = vld [vmem:[%s3 + $0x2b8] sm:$0xff]
      %v476 = vld [vmem:[%s3 + $0x2c0] sm:$0xff]
      %v477 = vld [vmem:[%s3 + $0x2c8] sm:$0xff]
      %v478 = vld [vmem:[%s3 + $0x2d0] sm:$0xff]
      %v479 = vld [vmem:[%s3 + $0x2d8] sm:$0xff]
      %v480 = vld [vmem:[%s3 + $0x2e0] sm:$0xff]
      %v481 = vld [vmem:[%s3 + $0x2e8] sm:$0xff]
      %v482 = vld [vmem:[%s3 + $0x2f0] sm:$0xff]
      %v483 = vld [vmem:[%s3 + $0x2f8] sm:$0xff]
      %v484 = vld [vmem:[%s3 + $0x300] sm:$0xff]
      %v485 = vld [vmem:[%s3 + $0x308] sm:$0xff]
      %v486 = vld [vmem:[%s3 + $0x310] sm:$0xff]
      %v487 = vld [vmem:[%s3 + $0x318] sm:$0xff]
      %v488 = vld [vmem:[%s3 + $0x320] sm:$0xff]
      %v489 = vld [vmem:[%s3 + $0x328] sm:$0xff]
      %v490 = vld [vmem:[%s3 + $0x330] sm:$0xff]
      %v491 = vld [vmem:[%s3 + $0x338] sm:$0xff]
      %v492 = vld [vmem:[%s3 + $0x340] sm:$0xff]
      %v493 = vld [vmem:[%s3 + $0x348] sm:$0xff]
      %v494 = vld [vmem:[%s3 + $0x350] sm:$0xff]
      %v495 = vld [vmem:[%s3 + $0x358] sm:$0xff]
      %v496 = vld [vmem:[%s3 + $0x360] sm:$0xff]
      %v497 = vld [vmem:[%s3 + $0x368] sm:$0xff]
      %v498 = vld [vmem:[%s3 + $0x370] sm:$0xff]
      %v499 = vld [vmem:[%s3 + $0x378] sm:$0xff]
      %v500 = vld [vmem:[%s3 + $0x380] sm:$0xff]
      %v501 = vld [vmem:[%s3 + $0x388] sm:$0xff]
      %v502 = vld [vmem:[%s3 + $0x390] sm:$0xff]
      %v503 = vld [vmem:[%s3 + $0x398] sm:$0xff]
      %v504 = vld [vmem:[%s3 + $0x3a0] sm:$0xff]
      %v505 = vld [vmem:[%s3 + $0x3a8] sm:$0xff]
      %v506 = vld [vmem:[%s3 + $0x3b0] sm:$0xff]
      %v507 = vld [vmem:[%s3 + $0x3b8] sm:$0xff]
      %v508 = vld [vmem:[%s3 + $0x3c0] sm:$0xff]
      %v509 = vld [vmem:[%s3 + $0x3c8] sm:$0xff]
      %v510 = vld [vmem:[%s3 + $0x3d0] sm:$0xff]
      %v511 = vld [vmem:[%s3 + $0x3d8] sm:$0xff]
      %v512 = vld [vmem:[%s3 + $0x3e0] sm:$0xff]
      %v513 = vld [vmem:[%s3 + $0x3e8] sm:$0xff]
      %v514 = vld [vmem:[%s3 + $0x3f0] sm:$0xff]
      %v515 = vld [vmem:[%s3 + $0x3f8] sm:$0xff]
      %v516 = vpack.c.bf16 %v384, %v384
      %v517 = vpack.c.bf16 %v385, %v385
      %v518 = vpack.c.bf16 %v386, %v386
      %v519 = vpack.c.bf16 %v387, %v387
      %v520 = vld [vmem:[%s309] sm:$0xf]
      %v522 = vlaneseq
      %v523 = vshrl.u32 %v522, 7
      %v524 = vsub.s32 0, %v523
      %v525 = vrot.slane %v520, %v524
      %v526 = vlaneseq
      %v527 = vshrl.u32 %v526, 7
      %v528 = vsub.s32 1, %v527
      %v529 = vrot.slane %v520, %v528
      %v530 = vlaneseq
      %v531 = vshrl.u32 %v530, 7
      %v532 = vsub.s32 2, %v531
      %v533 = vrot.slane %v520, %v532
      %v534 = vlaneseq
      %v535 = vshrl.u32 %v534, 7
      %v536 = vsub.s32 3, %v535
      %v537 = vrot.slane %v520, %v536
      %v670 = vunpack.c.l.b16 %v388
      %v671 = vunpack.c.h.b16 %v388
      %v672 = vunpack.c.l.b16 %v389
      %v673 = vunpack.c.h.b16 %v389
      %v674 = vunpack.c.l.b16 %v390
      %v675 = vunpack.c.h.b16 %v390
      %v676 = vunpack.c.l.b16 %v391
      %v677 = vunpack.c.h.b16 %v391
      %v678 = vunpack.c.l.b16 %v392
      %v679 = vunpack.c.h.b16 %v392
      %v680 = vunpack.c.l.b16 %v393
      %v681 = vunpack.c.h.b16 %v393
      %v682 = vunpack.c.l.b16 %v394
      %v683 = vunpack.c.h.b16 %v394
      %v684 = vunpack.c.l.b16 %v395
      %v685 = vunpack.c.h.b16 %v395
      %v686 = vunpack.c.l.b16 %v396
      %v687 = vunpack.c.h.b16 %v396
      %v688 = vunpack.c.l.b16 %v397
      %v689 = vunpack.c.h.b16 %v397
      %v690 = vunpack.c.l.b16 %v398
      %v691 = vunpack.c.h.b16 %v398
      %v692 = vunpack.c.l.b16 %v399
      %v693 = vunpack.c.h.b16 %v399
      %v694 = vunpack.c.l.b16 %v400
      %v695 = vunpack.c.h.b16 %v400
      %v696 = vunpack.c.l.b16 %v401
      %v697 = vunpack.c.h.b16 %v401
      %v698 = vunpack.c.l.b16 %v402
      %v699 = vunpack.c.h.b16 %v402
      %v700 = vunpack.c.l.b16 %v403
      %v701 = vunpack.c.h.b16 %v403
      %v702 = vunpack.c.l.b16 %v404
      %v703 = vunpack.c.h.b16 %v404
      %v704 = vunpack.c.l.b16 %v405
      %v705 = vunpack.c.h.b16 %v405
      %v706 = vunpack.c.l.b16 %v406
      %v707 = vunpack.c.h.b16 %v406
      %v708 = vunpack.c.l.b16 %v407
      %v709 = vunpack.c.h.b16 %v407
      %v710 = vunpack.c.l.b16 %v408
      %v711 = vunpack.c.h.b16 %v408
      %v712 = vunpack.c.l.b16 %v409
      %v713 = vunpack.c.h.b16 %v409
      %v714 = vunpack.c.l.b16 %v410
      %v715 = vunpack.c.h.b16 %v410
      %v716 = vunpack.c.l.b16 %v411
      %v717 = vunpack.c.h.b16 %v411
      %v718 = vunpack.c.l.b16 %v412
      %v719 = vunpack.c.h.b16 %v412
      %v720 = vunpack.c.l.b16 %v413
      %v721 = vunpack.c.h.b16 %v413
      %v722 = vunpack.c.l.b16 %v414
      %v723 = vunpack.c.h.b16 %v414
      %v724 = vunpack.c.l.b16 %v415
      %v725 = vunpack.c.h.b16 %v415
      %v726 = vunpack.c.l.b16 %v416
      %v727 = vunpack.c.h.b16 %v416
      %v728 = vunpack.c.l.b16 %v417
      %v729 = vunpack.c.h.b16 %v417
      %v730 = vunpack.c.l.b16 %v418
      %v731 = vunpack.c.h.b16 %v418
      %v732 = vunpack.c.l.b16 %v419
      %v733 = vunpack.c.h.b16 %v419
      %v734 = vunpack.c.l.b16 %v420
      %v735 = vunpack.c.h.b16 %v420
      %v736 = vunpack.c.l.b16 %v421
      %v737 = vunpack.c.h.b16 %v421
      %v738 = vunpack.c.l.b16 %v422
      %v739 = vunpack.c.h.b16 %v422
      %v740 = vunpack.c.l.b16 %v423
      %v741 = vunpack.c.h.b16 %v423
      %v742 = vunpack.c.l.b16 %v424
      %v743 = vunpack.c.h.b16 %v424
      %v744 = vunpack.c.l.b16 %v425
      %v745 = vunpack.c.h.b16 %v425
      %v746 = vunpack.c.l.b16 %v426
      %v747 = vunpack.c.h.b16 %v426
      %v748 = vunpack.c.l.b16 %v427
      %v749 = vunpack.c.h.b16 %v427
      %v750 = vunpack.c.l.b16 %v428
      %v751 = vunpack.c.h.b16 %v428
      %v752 = vunpack.c.l.b16 %v429
      %v753 = vunpack.c.h.b16 %v429
      %v754 = vunpack.c.l.b16 %v430
      %v755 = vunpack.c.h.b16 %v430
      %v756 = vunpack.c.l.b16 %v431
      %v757 = vunpack.c.h.b16 %v431
      %v758 = vunpack.c.l.b16 %v432
      %v759 = vunpack.c.h.b16 %v432
      %v760 = vunpack.c.l.b16 %v433
      %v761 = vunpack.c.h.b16 %v433
      %v762 = vunpack.c.l.b16 %v434
      %v763 = vunpack.c.h.b16 %v434
      %v764 = vunpack.c.l.b16 %v435
      %v765 = vunpack.c.h.b16 %v435
      %v766 = vunpack.c.l.b16 %v436
      %v767 = vunpack.c.h.b16 %v436
      %v768 = vunpack.c.l.b16 %v437
      %v769 = vunpack.c.h.b16 %v437
      %v770 = vunpack.c.l.b16 %v438
      %v771 = vunpack.c.h.b16 %v438
      %v772 = vunpack.c.l.b16 %v439
      %v773 = vunpack.c.h.b16 %v439
      %v774 = vunpack.c.l.b16 %v440
      %v775 = vunpack.c.h.b16 %v440
      %v776 = vunpack.c.l.b16 %v441
      %v777 = vunpack.c.h.b16 %v441
      %v778 = vunpack.c.l.b16 %v442
      %v779 = vunpack.c.h.b16 %v442
      %v780 = vunpack.c.l.b16 %v443
      %v781 = vunpack.c.h.b16 %v443
      %v782 = vunpack.c.l.b16 %v444
      %v783 = vunpack.c.h.b16 %v444
      %v784 = vunpack.c.l.b16 %v445
      %v785 = vunpack.c.h.b16 %v445
      %v786 = vunpack.c.l.b16 %v446
      %v787 = vunpack.c.h.b16 %v446
      %v788 = vunpack.c.l.b16 %v447
      %v789 = vunpack.c.h.b16 %v447
      %v790 = vunpack.c.l.b16 %v448
      %v791 = vunpack.c.h.b16 %v448
      %v792 = vunpack.c.l.b16 %v449
      %v793 = vunpack.c.h.b16 %v449
      %v794 = vunpack.c.l.b16 %v450
      %v795 = vunpack.c.h.b16 %v450
      %v796 = vunpack.c.l.b16 %v451
      %v797 = vunpack.c.h.b16 %v451
      %v798 = vunpack.c.l.b16 %v452
      %v799 = vunpack.c.h.b16 %v452
      %v800 = vunpack.c.l.b16 %v453
      %v801 = vunpack.c.h.b16 %v453
      %v802 = vunpack.c.l.b16 %v454
      %v803 = vunpack.c.h.b16 %v454
      %v804 = vunpack.c.l.b16 %v455
      %v805 = vunpack.c.h.b16 %v455
      %v806 = vunpack.c.l.b16 %v456
      %v807 = vunpack.c.h.b16 %v456
      %v808 = vunpack.c.l.b16 %v457
      %v809 = vunpack.c.h.b16 %v457
      %v810 = vunpack.c.l.b16 %v458
      %v811 = vunpack.c.h.b16 %v458
      %v812 = vunpack.c.l.b16 %v459
      %v813 = vunpack.c.h.b16 %v459
      %v814 = vunpack.c.l.b16 %v460
      %v815 = vunpack.c.h.b16 %v460
      %v816 = vunpack.c.l.b16 %v461
      %v817 = vunpack.c.h.b16 %v461
      %v818 = vunpack.c.l.b16 %v462
      %v819 = vunpack.c.h.b16 %v462
      %v820 = vunpack.c.l.b16 %v463
      %v821 = vunpack.c.h.b16 %v463
      %v822 = vunpack.c.l.b16 %v464
      %v823 = vunpack.c.h.b16 %v464
      %v824 = vunpack.c.l.b16 %v465
      %v825 = vunpack.c.h.b16 %v465
      %v826 = vunpack.c.l.b16 %v466
      %v827 = vunpack.c.h.b16 %v466
      %v828 = vunpack.c.l.b16 %v467
      %v829 = vunpack.c.h.b16 %v467
      %v830 = vunpack.c.l.b16 %v468
      %v831 = vunpack.c.h.b16 %v468
      %v832 = vunpack.c.l.b16 %v469
      %v833 = vunpack.c.h.b16 %v469
      %v834 = vunpack.c.l.b16 %v470
      %v835 = vunpack.c.h.b16 %v470
      %v836 = vunpack.c.l.b16 %v471
      %v837 = vunpack.c.h.b16 %v471
      %v838 = vunpack.c.l.b16 %v472
      %v839 = vunpack.c.h.b16 %v472
      %v840 = vunpack.c.l.b16 %v473
      %v841 = vunpack.c.h.b16 %v473
      %v842 = vunpack.c.l.b16 %v474
      %v843 = vunpack.c.h.b16 %v474
      %v844 = vunpack.c.l.b16 %v475
      %v845 = vunpack.c.h.b16 %v475
      %v846 = vunpack.c.l.b16 %v476
      %v847 = vunpack.c.h.b16 %v476
      %v848 = vunpack.c.l.b16 %v477
      %v849 = vunpack.c.h.b16 %v477
      %v850 = vunpack.c.l.b16 %v478
      %v851 = vunpack.c.h.b16 %v478
      %v852 = vunpack.c.l.b16 %v479
      %v853 = vunpack.c.h.b16 %v479
      %v854 = vunpack.c.l.b16 %v480
      %v855 = vunpack.c.h.b16 %v480
      %v856 = vunpack.c.l.b16 %v481
      %v857 = vunpack.c.h.b16 %v481
      %v858 = vunpack.c.l.b16 %v482
      %v859 = vunpack.c.h.b16 %v482
      %v860 = vunpack.c.l.b16 %v483
      %v861 = vunpack.c.h.b16 %v483
      %v862 = vunpack.c.l.b16 %v484
      %v863 = vunpack.c.h.b16 %v484
      %v864 = vunpack.c.l.b16 %v485
      %v865 = vunpack.c.h.b16 %v485
      %v866 = vunpack.c.l.b16 %v486
      %v867 = vunpack.c.h.b16 %v486
      %v868 = vunpack.c.l.b16 %v487
      %v869 = vunpack.c.h.b16 %v487
      %v870 = vunpack.c.l.b16 %v488
      %v871 = vunpack.c.h.b16 %v488
      %v872 = vunpack.c.l.b16 %v489
      %v873 = vunpack.c.h.b16 %v489
      %v874 = vunpack.c.l.b16 %v490
      %v875 = vunpack.c.h.b16 %v490
      %v876 = vunpack.c.l.b16 %v491
      %v877 = vunpack.c.h.b16 %v491
      %v878 = vunpack.c.l.b16 %v492
      %v879 = vunpack.c.h.b16 %v492
      %v880 = vunpack.c.l.b16 %v493
      %v881 = vunpack.c.h.b16 %v493
      %v882 = vunpack.c.l.b16 %v494
      %v883 = vunpack.c.h.b16 %v494
      %v884 = vunpack.c.l.b16 %v495
      %v885 = vunpack.c.h.b16 %v495
      %v886 = vunpack.c.l.b16 %v496
      %v887 = vunpack.c.h.b16 %v496
      %v888 = vunpack.c.l.b16 %v497
      %v889 = vunpack.c.h.b16 %v497
      %v890 = vunpack.c.l.b16 %v498
      %v891 = vunpack.c.h.b16 %v498
      %v892 = vunpack.c.l.b16 %v499
      %v893 = vunpack.c.h.b16 %v499
      %v894 = vunpack.c.l.b16 %v500
      %v895 = vunpack.c.h.b16 %v500
      %v896 = vunpack.c.l.b16 %v501
      %v897 = vunpack.c.h.b16 %v501
      %v898 = vunpack.c.l.b16 %v502
      %v899 = vunpack.c.h.b16 %v502
      %v900 = vunpack.c.l.b16 %v503
      %v901 = vunpack.c.h.b16 %v503
      %v902 = vunpack.c.l.b16 %v504
      %v903 = vunpack.c.h.b16 %v504
      %v904 = vunpack.c.l.b16 %v505
      %v905 = vunpack.c.h.b16 %v505
      %v906 = vunpack.c.l.b16 %v506
      %v907 = vunpack.c.h.b16 %v506
      %v908 = vunpack.c.l.b16 %v507
      %v909 = vunpack.c.h.b16 %v507
      %v910 = vunpack.c.l.b16 %v508
      %v911 = vunpack.c.h.b16 %v508
      %v912 = vunpack.c.l.b16 %v509
      %v913 = vunpack.c.h.b16 %v509
      %v914 = vunpack.c.l.b16 %v510
      %v915 = vunpack.c.h.b16 %v510
      %v916 = vunpack.c.l.b16 %v511
      %v917 = vunpack.c.h.b16 %v511
      %v918 = vunpack.c.l.b16 %v512
      %v919 = vunpack.c.h.b16 %v512
      %v920 = vunpack.c.l.b16 %v513
      %v921 = vunpack.c.h.b16 %v513
      %v922 = vunpack.c.l.b16 %v514
      %v923 = vunpack.c.h.b16 %v514
      %v924 = vunpack.c.l.b16 %v515
      %v925 = vunpack.c.h.b16 %v515
      %v926 = vpack.c.b16 %v674, %v670
      %v927 = vpack.c.b16 %v675, %v671
      %v928 = vpack.c.b16 %v676, %v672
      %v929 = vpack.c.b16 %v677, %v673
      %v930 = vpack.c.b16 %v682, %v678
      %v931 = vpack.c.b16 %v683, %v679
      %v932 = vpack.c.b16 %v684, %v680
      %v933 = vpack.c.b16 %v685, %v681
      %v934 = vpack.c.b16 %v690, %v686
      %v935 = vpack.c.b16 %v691, %v687
      %v936 = vpack.c.b16 %v692, %v688
      %v937 = vpack.c.b16 %v693, %v689
      %v938 = vpack.c.b16 %v698, %v694
      %v939 = vpack.c.b16 %v699, %v695
      %v940 = vpack.c.b16 %v700, %v696
      %v941 = vpack.c.b16 %v701, %v697
      %v942 = vpack.c.b16 %v706, %v702
      %v943 = vpack.c.b16 %v707, %v703
      %v944 = vpack.c.b16 %v708, %v704
      %v945 = vpack.c.b16 %v709, %v705
      %v946 = vpack.c.b16 %v714, %v710
      %v947 = vpack.c.b16 %v715, %v711
      %v948 = vpack.c.b16 %v716, %v712
      %v949 = vpack.c.b16 %v717, %v713
      %v950 = vpack.c.b16 %v722, %v718
      %v951 = vpack.c.b16 %v723, %v719
      %v952 = vpack.c.b16 %v724, %v720
      %v953 = vpack.c.b16 %v725, %v721
      %v954 = vpack.c.b16 %v730, %v726
      %v955 = vpack.c.b16 %v731, %v727
      %v956 = vpack.c.b16 %v732, %v728
      %v957 = vpack.c.b16 %v733, %v729
      %v958 = vpack.c.b16 %v738, %v734
      %v959 = vpack.c.b16 %v739, %v735
      %v960 = vpack.c.b16 %v740, %v736
      %v961 = vpack.c.b16 %v741, %v737
      %v962 = vpack.c.b16 %v746, %v742
      %v963 = vpack.c.b16 %v747, %v743
      %v964 = vpack.c.b16 %v748, %v744
      %v965 = vpack.c.b16 %v749, %v745
      %v966 = vpack.c.b16 %v754, %v750
      %v967 = vpack.c.b16 %v755, %v751
      %v968 = vpack.c.b16 %v756, %v752
      %v969 = vpack.c.b16 %v757, %v753
      %v970 = vpack.c.b16 %v762, %v758
      %v971 = vpack.c.b16 %v763, %v759
      %v972 = vpack.c.b16 %v764, %v760
      %v973 = vpack.c.b16 %v765, %v761
      %v974 = vpack.c.b16 %v770, %v766
      %v975 = vpack.c.b16 %v771, %v767
      %v976 = vpack.c.b16 %v772, %v768
      %v977 = vpack.c.b16 %v773, %v769
      %v978 = vpack.c.b16 %v778, %v774
      %v979 = vpack.c.b16 %v779, %v775
      %v980 = vpack.c.b16 %v780, %v776
      %v981 = vpack.c.b16 %v781, %v777
      %v982 = vpack.c.b16 %v786, %v782
      %v983 = vpack.c.b16 %v787, %v783
      %v984 = vpack.c.b16 %v788, %v784
      %v985 = vpack.c.b16 %v789, %v785
      %v986 = vpack.c.b16 %v794, %v790
      %v987 = vpack.c.b16 %v795, %v791
      %v988 = vpack.c.b16 %v796, %v792
      %v989 = vpack.c.b16 %v797, %v793
      %v990 = vpack.c.b16 %v802, %v798
      %v991 = vpack.c.b16 %v803, %v799
      %v992 = vpack.c.b16 %v804, %v800
      %v993 = vpack.c.b16 %v805, %v801
      %v994 = vpack.c.b16 %v810, %v806
      %v995 = vpack.c.b16 %v811, %v807
      %v996 = vpack.c.b16 %v812, %v808
      %v997 = vpack.c.b16 %v813, %v809
      %v998 = vpack.c.b16 %v818, %v814
      %v999 = vpack.c.b16 %v819, %v815
      %v1000 = vpack.c.b16 %v820, %v816
      %v1001 = vpack.c.b16 %v821, %v817
      %v1002 = vpack.c.b16 %v826, %v822
      %v1003 = vpack.c.b16 %v827, %v823
      %v1004 = vpack.c.b16 %v828, %v824
      %v1005 = vpack.c.b16 %v829, %v825
      %v1006 = vpack.c.b16 %v834, %v830
      %v1007 = vpack.c.b16 %v835, %v831
      %v1008 = vpack.c.b16 %v836, %v832
      %v1009 = vpack.c.b16 %v837, %v833
      %v1010 = vpack.c.b16 %v842, %v838
      %v1011 = vpack.c.b16 %v843, %v839
      %v1012 = vpack.c.b16 %v844, %v840
      %v1013 = vpack.c.b16 %v845, %v841
      %v1014 = vpack.c.b16 %v850, %v846
      %v1015 = vpack.c.b16 %v851, %v847
      %v1016 = vpack.c.b16 %v852, %v848
      %v1017 = vpack.c.b16 %v853, %v849
      %v1018 = vpack.c.b16 %v858, %v854
      %v1019 = vpack.c.b16 %v859, %v855
      %v1020 = vpack.c.b16 %v860, %v856
      %v1021 = vpack.c.b16 %v861, %v857
      %v1022 = vpack.c.b16 %v866, %v862
      %v1023 = vpack.c.b16 %v867, %v863
      %v1024 = vpack.c.b16 %v868, %v864
      %v1025 = vpack.c.b16 %v869, %v865
      %v1026 = vpack.c.b16 %v874, %v870
      %v1027 = vpack.c.b16 %v875, %v871
      %v1028 = vpack.c.b16 %v876, %v872
      %v1029 = vpack.c.b16 %v877, %v873
      %v1030 = vpack.c.b16 %v882, %v878
      %v1031 = vpack.c.b16 %v883, %v879
      %v1032 = vpack.c.b16 %v884, %v880
      %v1033 = vpack.c.b16 %v885, %v881
      %v1034 = vpack.c.b16 %v890, %v886
      %v1035 = vpack.c.b16 %v891, %v887
      %v1036 = vpack.c.b16 %v892, %v888
      %v1037 = vpack.c.b16 %v893, %v889
      %v1038 = vpack.c.b16 %v898, %v894
      %v1039 = vpack.c.b16 %v899, %v895
      %v1040 = vpack.c.b16 %v900, %v896
      %v1041 = vpack.c.b16 %v901, %v897
      %v1042 = vpack.c.b16 %v906, %v902
      %v1043 = vpack.c.b16 %v907, %v903
      %v1044 = vpack.c.b16 %v908, %v904
      %v1045 = vpack.c.b16 %v909, %v905
      %v1046 = vpack.c.b16 %v914, %v910
      %v1047 = vpack.c.b16 %v915, %v911
      %v1048 = vpack.c.b16 %v916, %v912
      %v1049 = vpack.c.b16 %v917, %v913
      %v1050 = vpack.c.b16 %v922, %v918
      %v1051 = vpack.c.b16 %v923, %v919
      %v1052 = vpack.c.b16 %v924, %v920
      %v1053 = vpack.c.b16 %v925, %v921
      %1182 = vmatprep.subr.bf16.mxu0 %v955
      %1183 = vmatpush1.bf16.msra.mxu0 %v954
      %1184 = vmatprep.subr.bf16.mxu0 %v951
      %1185 = vmatpush1.bf16.msra.mxu0 %v950
      %1186 = vmatprep.subr.bf16.mxu0 %v947
      %1187 = vmatpush1.bf16.msra.mxu0 %v946
      %1188 = vmatprep.subr.bf16.mxu0 %v943
      %1189 = vmatpush1.bf16.msra.mxu0 %v942
      %1190 = vmatprep.subr.bf16.mxu0 %v939
      %1191 = vmatpush1.bf16.msra.mxu0 %v938
      %1192 = vmatprep.subr.bf16.mxu0 %v935
      %1193 = vmatpush1.bf16.msra.mxu0 %v934
      %1194 = vmatprep.subr.bf16.mxu0 %v931
      %1195 = vmatpush1.bf16.msra.mxu0 %v930
      %1196 = vmatprep.subr.bf16.mxu0 %v927
      %1197 = vmatpush1.bf16.msra.mxu0 %v926
      %1198 = vmatprep.subr.bf16.mxu0 %v987
      %1199 = vmatpush2.bf16.msra.mxu0 %v986
      %1200 = vmatprep.subr.bf16.mxu0 %v983
      %1201 = vmatpush2.bf16.msra.mxu0 %v982
      %1202 = vmatprep.subr.bf16.mxu0 %v979
      %1203 = vmatpush2.bf16.msra.mxu0 %v978
      %1204 = vmatprep.subr.bf16.mxu0 %v975
      %1205 = vmatpush2.bf16.msra.mxu0 %v974
      %1206 = vmatprep.subr.bf16.mxu0 %v971
      %1207 = vmatpush2.bf16.msra.mxu0 %v970
      %1208 = vmatprep.subr.bf16.mxu0 %v967
      %1209 = vmatpush2.bf16.msra.mxu0 %v966
      %1210 = vmatprep.subr.bf16.mxu0 %v963
      %1211 = vmatpush2.bf16.msra.mxu0 %v962
      %1212 = vmatprep.subr.bf16.mxu0 %v959
      %1213 = vmatpush2.bf16.msra.mxu0 %v958
      %1214 = vmatprep.mubr.bf16.mxu0 %v517
      %1215 = vmatmul.mubr.bf16.gmra.mxu0 %v516
      %v1216 = vpop.f32.mrf.mxu0
      %v1217 = vadd.f32 %v525, %v1216
      %v1218 = vpop.f32.mrf.mxu0
      %v1219 = vadd.f32 %v529, %v1218
      %v1220 = vpop.f32.mrf.mxu0
      %v1221 = vpop.f32.mrf.mxu0
      %1222 = vdwg.mxu0
      %1223 = vmatprep.subr.bf16.mxu0 %v1019
      %1224 = vmatpush1.bf16.msra.mxu0 %v1018
      %1225 = vmatprep.subr.bf16.mxu0 %v1015
      %1226 = vmatpush1.bf16.msra.mxu0 %v1014
      %1227 = vmatprep.subr.bf16.mxu0 %v1011
      %1228 = vmatpush1.bf16.msra.mxu0 %v1010
      %1229 = vmatprep.subr.bf16.mxu0 %v1007
      %1230 = vmatpush1.bf16.msra.mxu0 %v1006
      %1231 = vmatprep.subr.bf16.mxu0 %v1003
      %1232 = vmatpush1.bf16.msra.mxu0 %v1002
      %1233 = vmatprep.subr.bf16.mxu0 %v999
      %1234 = vmatpush1.bf16.msra.mxu0 %v998
      %1235 = vmatprep.subr.bf16.mxu0 %v995
      %1236 = vmatpush1.bf16.msra.mxu0 %v994
      %1237 = vmatprep.subr.bf16.mxu0 %v991
      %1238 = vmatpush1.bf16.msra.mxu0 %v990
      %1239 = vmatprep.subr.bf16.mxu0 %v1051
      %1240 = vmatpush2.bf16.msra.mxu0 %v1050
      %1241 = vmatprep.subr.bf16.mxu0 %v1047
      %1242 = vmatpush2.bf16.msra.mxu0 %v1046
      %1243 = vmatprep.subr.bf16.mxu0 %v1043
      %1244 = vmatpush2.bf16.msra.mxu0 %v1042
      %1245 = vmatprep.subr.bf16.mxu0 %v1039
      %1246 = vmatpush2.bf16.msra.mxu0 %v1038
      %1247 = vmatprep.subr.bf16.mxu0 %v1035
      %1248 = vmatpush2.bf16.msra.mxu0 %v1034
      %1249 = vmatprep.subr.bf16.mxu0 %v1031
      %1250 = vmatpush2.bf16.msra.mxu0 %v1030
      %1251 = vmatprep.subr.bf16.mxu0 %v1027
      %1252 = vmatpush2.bf16.msra.mxu0 %v1026
      %1253 = vmatprep.subr.bf16.mxu0 %v1023
      %1254 = vmatpush2.bf16.msra.mxu0 %v1022
      %1255 = vmatprep.mubr.bf16.mxu0 %v519
      %1256 = vmatmul.mubr.bf16.gmra.mxu0 %v518
      %v1257 = vpop.f32.mrf.mxu0
      %v1258 = vadd.f32 %v1217, %v1257
      %v1259 = vpop.f32.mrf.mxu0
      %v1260 = vadd.f32 %v1219, %v1259
      %v1261 = vpop.f32.mrf.mxu0
      %v1262 = vpop.f32.mrf.mxu0
      %1263 = vdwg.mxu0
      %1264 = vmatprep.subr.bf16.mxu0 %v957
      %1265 = vmatpush1.bf16.msra.mxu0 %v956
      %1266 = vmatprep.subr.bf16.mxu0 %v953
      %1267 = vmatpush1.bf16.msra.mxu0 %v952
      %1268 = vmatprep.subr.bf16.mxu0 %v949
      %1269 = vmatpush1.bf16.msra.mxu0 %v948
      %1270 = vmatprep.subr.bf16.mxu0 %v945
      %1271 = vmatpush1.bf16.msra.mxu0 %v944
      %1272 = vmatprep.subr.bf16.mxu0 %v941
      %1273 = vmatpush1.bf16.msra.mxu0 %v940
      %1274 = vmatprep.subr.bf16.mxu0 %v937
      %1275 = vmatpush1.bf16.msra.mxu0 %v936
      %1276 = vmatprep.subr.bf16.mxu0 %v933
      %1277 = vmatpush1.bf16.msra.mxu0 %v932
      %1278 = vmatprep.subr.bf16.mxu0 %v929
      %1279 = vmatpush1.bf16.msra.mxu0 %v928
      %1280 = vmatprep.subr.bf16.mxu0 %v989
      %1281 = vmatpush2.bf16.msra.mxu0 %v988
      %1282 = vmatprep.subr.bf16.mxu0 %v985
      %1283 = vmatpush2.bf16.msra.mxu0 %v984
      %1284 = vmatprep.subr.bf16.mxu0 %v981
      %1285 = vmatpush2.bf16.msra.mxu0 %v980
      %1286 = vmatprep.subr.bf16.mxu0 %v977
      %1287 = vmatpush2.bf16.msra.mxu0 %v976
      %1288 = vmatprep.subr.bf16.mxu0 %v973
      %1289 = vmatpush2.bf16.msra.mxu0 %v972
      %1290 = vmatprep.subr.bf16.mxu0 %v969
      %1291 = vmatpush2.bf16.msra.mxu0 %v968
      %1292 = vmatprep.subr.bf16.mxu0 %v965
      %1293 = vmatpush2.bf16.msra.mxu0 %v964
      %1294 = vmatprep.subr.bf16.mxu0 %v961
      %1295 = vmatpush2.bf16.msra.mxu0 %v960
      %1296 = vmatprep.mubr.bf16.mxu0 %v517
      %1297 = vmatmul.mubr.bf16.gmra.mxu0 %v516
      %v1298 = vpop.f32.mrf.mxu0
      %v1299 = vadd.f32 %v533, %v1298
      %v1300 = vpop.f32.mrf.mxu0
      %v1301 = vadd.f32 %v537, %v1300
      %v1302 = vpop.f32.mrf.mxu0
      %v1303 = vpop.f32.mrf.mxu0
      %1304 = vdwg.mxu0
      %1305 = vmatprep.subr.bf16.mxu0 %v1021
      %1306 = vmatpush1.bf16.msra.mxu0 %v1020
      %1307 = vmatprep.subr.bf16.mxu0 %v1017
      %1308 = vmatpush1.bf16.msra.mxu0 %v1016
      %1309 = vmatprep.subr.bf16.mxu0 %v1013
      %1310 = vmatpush1.bf16.msra.mxu0 %v1012
      %1311 = vmatprep.subr.bf16.mxu0 %v1009
      %1312 = vmatpush1.bf16.msra.mxu0 %v1008
      %1313 = vmatprep.subr.bf16.mxu0 %v1005
      %1314 = vmatpush1.bf16.msra.mxu0 %v1004
      %1315 = vmatprep.subr.bf16.mxu0 %v1001
      %1316 = vmatpush1.bf16.msra.mxu0 %v1000
      %1317 = vmatprep.subr.bf16.mxu0 %v997
      %1318 = vmatpush1.bf16.msra.mxu0 %v996
      %1319 = vmatprep.subr.bf16.mxu0 %v993
      %1320 = vmatpush1.bf16.msra.mxu0 %v992
      %1321 = vmatprep.subr.bf16.mxu0 %v1053
      %1322 = vmatpush2.bf16.msra.mxu0 %v1052
      %1323 = vmatprep.subr.bf16.mxu0 %v1049
      %1324 = vmatpush2.bf16.msra.mxu0 %v1048
      %1325 = vmatprep.subr.bf16.mxu0 %v1045
      %1326 = vmatpush2.bf16.msra.mxu0 %v1044
      %1327 = vmatprep.subr.bf16.mxu0 %v1041
      %1328 = vmatpush2.bf16.msra.mxu0 %v1040
      %1329 = vmatprep.subr.bf16.mxu0 %v1037
      %1330 = vmatpush2.bf16.msra.mxu0 %v1036
      %1331 = vmatprep.subr.bf16.mxu0 %v1033
      %1332 = vmatpush2.bf16.msra.mxu0 %v1032
      %1333 = vmatprep.subr.bf16.mxu0 %v1029
      %1334 = vmatpush2.bf16.msra.mxu0 %v1028
      %1335 = vmatprep.subr.bf16.mxu0 %v1025
      %1336 = vmatpush2.bf16.msra.mxu0 %v1024
      %1337 = vmatprep.mubr.bf16.mxu0 %v519
      %1338 = vmatmul.mubr.bf16.gmra.mxu0 %v518
      %v1339 = vpop.f32.mrf.mxu0
      %v1340 = vadd.f32 %v1299, %v1339
      %v1341 = vpop.f32.mrf.mxu0
      %v1342 = vadd.f32 %v1301, %v1341
      %v1343 = vpop.f32.mrf.mxu0
      %v1344 = vpop.f32.mrf.mxu0
      %1345 = vdwg.mxu0
      %1346 = vst [vmem:[%s318] sm:$0x3f] %v1258
      %1347 = vst [vmem:[%s318 + $0x8] sm:$0x3f] %v1260
      %1348 = vst [vmem:[%s318 + $0x10] sm:$0x3f] %v1340
      %1349 = vst [vmem:[%s318 + $0x18] sm:$0x3f] %v1342
      %v1350 = vlaneseq
      %v1351 = vshrl.u32 %v1350, 7
      %s1352 = smul.u32 %s23, 6
      %v1353 = vstv %s1352
      %v1354 = vadd.s32 %v1351, %v1353
      %vm1355 = vcmp.lt.s32.totalorder %v1354, 6
      %v1356 = vsel %vm1355, 1, 0
      %vm1357 = vcmp.eq.s32.totalorder %v1356, 1
      %v1358 = vsel %vm1357, %v1258, 0.0
      %v1359 = vsel %vm1357, %v1260, 0.0
      %v1360 = vsel %vm1357, %v1340, 0.0
      %v1361 = vsel %vm1357, %v1342, 0.0
      %vm1362 = vcmask 1045504
      %v1363 = vsel %vm1362, %v1358, 0.0
      %v1364 = vrot.slane %v1363, 4
      %v1365 = vadd.f32 %v1363, %v1364
      %v1366 = vrot.slane %v1365, 2
      %v1367 = vadd.f32 %v1365, %v1366
      %v1368 = vrot.slane %v1367, 1
      %v1369 = vadd.f32 %v1367, %v1368
      %v1370 = vsel %vm1362, %v1359, 0.0
      %v1371 = vrot.slane %v1370, 4
      %v1372 = vadd.f32 %v1370, %v1371
      %v1373 = vrot.slane %v1372, 2
      %v1374 = vadd.f32 %v1372, %v1373
      %v1375 = vrot.slane %v1374, 1
      %v1376 = vadd.f32 %v1374, %v1375
      %v1377 = vsel %vm1362, %v1360, 0.0
      %v1378 = vrot.slane %v1377, 4
      %v1379 = vadd.f32 %v1377, %v1378
      %v1380 = vrot.slane %v1379, 2
      %v1381 = vadd.f32 %v1379, %v1380
      %v1382 = vrot.slane %v1381, 1
      %v1383 = vadd.f32 %v1381, %v1382
      %v1384 = vsel %vm1362, %v1361, 0.0
      %v1385 = vrot.slane %v1384, 4
      %v1386 = vadd.f32 %v1384, %v1385
      %v1387 = vrot.slane %v1386, 2
      %v1388 = vadd.f32 %v1386, %v1387
      %v1389 = vrot.slane %v1388, 1
      %v1390 = vadd.f32 %v1388, %v1389
      %v1395 = vcombine.low %v1369, %v1376
      %v1396 = vcombine.low %v1383, %v1390
      %v1398 = vunpack.c.l.s4 1966171168
      %v1399 = vunpack.c.0.s8 %v1398
      %v1400 = vlaneseq
      %v1401 = vshrl.u32 %v1400, 7
      %v1402 = vsub.s32 %v1399, %v1401
      %v1403 = vrot.slane %v1395, %v1402
      %v1405 = vunpack.c.l.s4 1966171168
      %v1406 = vunpack.c.0.s8 %v1405
      %v1407 = vlaneseq
      %v1408 = vshrl.u32 %v1407, 7
      %v1409 = vsub.s32 %v1406, %v1408
      %v1410 = vrot.slane %v1396, %v1409
      %v1411 = vcombine.low %v1403, %v1410
      %v1413 = vunpack.c.l.s4 1966171168
      %v1414 = vunpack.c.0.s8 %v1413
      %v1415 = vlaneseq
      %v1416 = vshrl.u32 %v1415, 7
      %v1417 = vsub.s32 %v1414, %v1416
      %v1418 = vrot.slane %v1411, %v1417
      %v1420 = vlaneseq
      %vm1421 = vcmp.ge.s32.totalorder %v1420, 0
      %vm1422 = vcmp.lt.s32.totalorder %v1420, 512
      %vm1423 = vmand %vm1421, %vm1422
      %1424 = vst.msk [vmem:[%s327] ss:$2 sm:$0xf] %vm1423, %v1418
      %v1425 = vmul.f32 %v1358, %v1358
      %v1426 = vmul.f32 %v1359, %v1359
      %v1427 = vmul.f32 %v1360, %v1360
      %v1428 = vmul.f32 %v1361, %v1361
      %v1429 = vsel %vm1362, %v1425, 0.0
      %v1430 = vrot.slane %v1429, 4
      %v1431 = vadd.f32 %v1429, %v1430
      %v1432 = vrot.slane %v1431, 2
      %v1433 = vadd.f32 %v1431, %v1432
      %v1434 = vrot.slane %v1433, 1
      %v1435 = vadd.f32 %v1433, %v1434
      %v1436 = vsel %vm1362, %v1426, 0.0
      %v1437 = vrot.slane %v1436, 4
      %v1438 = vadd.f32 %v1436, %v1437
      %v1439 = vrot.slane %v1438, 2
      %v1440 = vadd.f32 %v1438, %v1439
      %v1441 = vrot.slane %v1440, 1
      %v1442 = vadd.f32 %v1440, %v1441
      %v1443 = vsel %vm1362, %v1427, 0.0
      %v1444 = vrot.slane %v1443, 4
      %v1445 = vadd.f32 %v1443, %v1444
      %v1446 = vrot.slane %v1445, 2
      %v1447 = vadd.f32 %v1445, %v1446
      %v1448 = vrot.slane %v1447, 1
      %v1449 = vadd.f32 %v1447, %v1448
      %v1450 = vsel %vm1362, %v1428, 0.0
      %v1451 = vrot.slane %v1450, 4
      %v1452 = vadd.f32 %v1450, %v1451
      %v1453 = vrot.slane %v1452, 2
      %v1454 = vadd.f32 %v1452, %v1453
      %v1455 = vrot.slane %v1454, 1
      %v1456 = vadd.f32 %v1454, %v1455
      %v1461 = vcombine.low %v1435, %v1442
      %v1462 = vcombine.low %v1449, %v1456
      %v1464 = vunpack.c.l.s4 1966171168
      %v1465 = vunpack.c.0.s8 %v1464
      %v1466 = vlaneseq
      %v1467 = vshrl.u32 %v1466, 7
      %v1468 = vsub.s32 %v1465, %v1467
      %v1469 = vrot.slane %v1461, %v1468
      %v1471 = vunpack.c.l.s4 1966171168
      %v1472 = vunpack.c.0.s8 %v1471
      %v1473 = vlaneseq
      %v1474 = vshrl.u32 %v1473, 7
      %v1475 = vsub.s32 %v1472, %v1474
      %v1476 = vrot.slane %v1462, %v1475
      %v1477 = vcombine.low %v1469, %v1476
      %v1479 = vunpack.c.l.s4 1966171168
      %v1480 = vunpack.c.0.s8 %v1479
      %v1481 = vlaneseq
      %v1482 = vshrl.u32 %v1481, 7
      %v1483 = vsub.s32 %v1480, %v1482
      %v1484 = vrot.slane %v1477, %v1483
      %s1486 = scalar_lea.vmem %s327, 1
      %1487 = vst.msk [vmem:[%s1486] ss:$2 sm:$0xf] %vm1423, %v1484
      %p1488 = scmp.lt.s32.totalorder %s22, 1
      %s1489 = scalar_select %p1488, %s22, 1
      %p1490 = scmp.lt.s32.totalorder %s23, 0
      %s1491 = scalar_select %p1490, %s23, 0
      %s1492 = smul.addr %s1491, 4
      %s1493 = smul.addr %s1489, 4
      %s1494 = sadd.s32 %s1492, %s1493
      %s1495 = smul.addr %s1494, 8
      %s1496 = scalar_lea.vmem %s5, %s1495
      %p1497 = scmp.lt.s32.totalorder %s22, 1
      %s1498 = scalar_select %p1497, %s22, 1
      %p1499 = scmp.lt.s32.totalorder %s23, 0
      %s1500 = scalar_select %p1499, %s23, 0
      %s1501 = smul.addr %s1500, 4
      %s1502 = smul.addr %s1498, 4
      %s1503 = sadd.s32 %s1501, %s1502
      %s1504 = smul.addr %s1503, 2
      %s1505 = scalar_lea.vmem %s6, %s1504
      // Predicated region
      $region41: #{px_forward.6} parent=39 // pred_check
        %p1506 = pneg %p167
      $region42: #{px_forward.6} parent=39 // pred_check_branch
        %1508 = sbr.rel (%p1506) target = $region44
      $region43: #{px_forward.6} parent=39 // pred_region
        _
      $region44: #{px_forward.6} parent=39 // pred_fallthru
        _
      // Predicated region
      $region45: #{px_forward.6} parent=39 // pred_check
        %p1509 = pneg %p195
      $region46: #{px_forward.6} parent=39 // pred_check_branch
        %1511 = sbr.rel (%p1509) target = $region48
      $region47: #{px_forward.6} parent=39 // pred_region
        _
      $region48: #{px_forward.6} parent=39 // pred_fallthru
        _
    $region40: #{px_forward.6} parent=5 // pred_fallthru
      _
    %p1512 = scmp.le.s32.totalorder 2, %s13
    // Predicated region
    $region49: #{px_forward.6} parent=5 // pred_check
      %p1513 = pneg %p1512
    $region50: #{px_forward.6} parent=5 // pred_check_branch
      %1515 = sbr.rel (%p1513) target = $region52
    $region51: #{px_forward.6} parent=5 // pred_region
      %s1516 = ssub.s32 %s13, 2
      // Predicated region
      $region53: #{px_forward.6} parent=51 // pred_check
        %p1517 = pneg %p173
      $region54: #{px_forward.6} parent=51 // pred_check_branch
        %1519 = sbr.rel (%p1517) target = $region56
      $region55: #{px_forward.6} parent=51 // pred_region
        %p1520 = scmp.lt.s32.totalorder %s24, 1
        %s1521 = scalar_select %p1520, %s24, 1
        %p1522 = scmp.lt.s32.totalorder %s25, 0
        %s1523 = scalar_select %p1522, %s25, 0
        %s1524 = smul.addr %s1523, 4
        %s1525 = smul.addr %s1521, 4
        %s1526 = sadd.s32 %s1524, %s1525
        %s1527 = smul.addr %s1526, 8
        %s1528 = scalar_lea.vmem %s5, %s1527
      $region56: #{px_forward.6} parent=51 // pred_fallthru
        _
      // Predicated region
      $region57: #{px_forward.6} parent=51 // pred_check
        %p1529 = pneg %p201
      $region58: #{px_forward.6} parent=51 // pred_check_branch
        %1531 = sbr.rel (%p1529) target = $region60
      $region59: #{px_forward.6} parent=51 // pred_region
        %p1532 = scmp.lt.s32.totalorder %s24, 1
        %s1533 = scalar_select %p1532, %s24, 1
        %p1534 = scmp.lt.s32.totalorder %s25, 0
        %s1535 = scalar_select %p1534, %s25, 0
        %s1536 = smul.addr %s1535, 4
        %s1537 = smul.addr %s1533, 4
        %s1538 = sadd.s32 %s1536, %s1537
        %s1539 = smul.addr %s1538, 2
        %s1540 = scalar_lea.vmem %s6, %s1539
      $region60: #{px_forward.6} parent=51 // pred_fallthru
        _
    $region52: #{px_forward.6} parent=5 // pred_fallthru
      _
  $region6: #{px_forward.6} parent=0 // loop_footer
    %s17 = sadd.s32 1, %s13
  $region7: #{px_forward.6} parent=0 // loop_footer_branch
    %12 = sbr.rel target = $region3
  $region8: #{px_forward.6} parent=0 // loop_exit
    _

// kernel: px_forward.9
$region0: #{px_forward.9}
  #allocation0 [shape = 'u32[]', space=smem, size = 0x4, offset = 0x4, fixed_abs, tag = 'smem constant byte address 0x4 - core index']
  #allocation1 [shape = 'u32[144,128]{1,0:T(1,128)}', space=vmem, size = 0x12000, scoped, tag = 'internal scratch']
  %s0 = inlined_call_operand.vmem [shape: f32[2,6,512], index: 0, kind: input, shape index: {}]
  %s1 = inlined_call_operand.vmem [shape: f32[1,512], index: 1, kind: input, shape index: {}]
  %s2 = inlined_call_operand.vmem [shape: f32[1,512], index: 2, kind: input, shape index: {}]
  %s3 = inlined_call_operand.vmem [shape: bf16[512,128], index: 3, kind: input, shape index: {}]
  %s4 = inlined_call_operand.vmem [shape: f32[1,128], index: 4, kind: input, shape index: {}]
  %s5 = inlined_call_operand.vmem [shape: f32[2,6,128], index: 5, kind: output, shape index: {}]
  %s6 = sld [smem:[#allocation0]]
  $region53: #{px_forward.9} parent=0
    _
  %s8 = ssub.s32 1, %s6
  %s9 = scalar_select 0, %s8, %s6
  loop: start=0, step=1, limit=4
  $region2: #{px_forward.9} parent=0 // loop_pre_header
    _
  $region3: #{px_forward.9} parent=0 // loop_header
    %s11 = sphi 0, %s15
    %p12 = scmp.ge.s32.totalorder %s11, 4
    %s18 = sphi 0, %s30
    %s19 = sphi 0, %s26
    %s20 = sphi 0, %s18
    %s21 = sphi 0, %s19
    %s22 = sphi 0, %s20
    %s23 = sphi 0, %s21
    %s35 = sphi 0, %s37
    %s38 = sphi 0, %s35
    %s39 = sphi 0, %s38
    %s55 = sphi 0, %s39
    %s59 = sphi 0, %s59
    %s61 = sphi 0, %s59
    %s62 = sphi 0, %s61
    %s76 = sphi 0, %s62
    %s80 = sphi 0, %s80
    %s82 = sphi 0, %s80
    %s83 = sphi 0, %s82
    %s97 = sphi 0, %s83
    %s101 = sphi 0, %s101
    %s103 = sphi 0, %s101
    %s104 = sphi 0, %s103
    %s118 = sphi 0, %s104
    %s122 = sphi 0, %s122
    %s124 = sphi 0, %s122
    %s125 = sphi 0, %s124
    %s139 = sphi 0, %s125
    %s147 = sphi 0, %s149
    %s150 = sphi 0, %s147
    %s151 = sphi 0, %s150
    %s167 = sphi 0, %s151
  $region4: #{px_forward.9} parent=0 // loop_header_branch
    %14 = sbr.rel (%p12) target = $region8
  $region5: #{px_forward.9} parent=0 // loop_body
    %s16 = ssub.s32 %s11, 1
    %s17 = ssub.s32 %s11, 2
    %s24 = sadd.s32 1, %s19
    %p25 = scmp.ge.s32.totalorder %s24, 1
    %s26 = scalar_select %p25, 0, %s24
    %s27 = sadd.s32 1, %s18
    %s28 = scalar_select %p25, %s27, %s18
    %p29 = scmp.ge.s32.totalorder %s28, 2
    %s30 = scalar_select %p29, 0, %s28
    %s31 = ssub.s32 %s18, %s30
    %s32 = ssub.s32 %s19, %s26
    %s33 = sor.u32 %s31, %s32
    %p34 = scmp.eq.s32.totalorder %s33, 0
    %s36 = sadd.s32 %s35, 1
    %s37 = scalar_select %p34, %s35, %s36
    %p40 = pneg %p34
    %p41 = scmp.eq.s32.totalorder %s11, 1
    %p42 = por %p40, %p41
    %p43 = scmp.ne.s32.totalorder %s35, %s38
    %p44 = scmp.eq.s32.totalorder %s11, 0
    %p45 = por %p43, %p44
    %p46 = scmp.ne.s32.totalorder %s35, %s38
    %p47 = scmp.eq.s32.totalorder %s16, 1
    %p48 = por %p46, %p47
    %p49 = scmp.ne.s32.totalorder %s38, %s39
    %p50 = scmp.eq.s32.totalorder %s16, 0
    %p51 = por %p49, %p50
    %p52 = scmp.ne.s32.totalorder %s38, %s39
    %p53 = scmp.eq.s32.totalorder %s17, 1
    %p54 = por %p52, %p53
    %p56 = scmp.ne.s32.totalorder %s39, %s55
    %p57 = scmp.eq.s32.totalorder %s17, 0
    %p58 = por %p56, %p57
    %s60 = sadd.s32 %s59, 1
    %p63 = scmp.eq.s32.totalorder %s11, 1
    %p64 = scmp.ne.s32.totalorder %s59, %s61
    %p65 = scmp.eq.s32.totalorder %s11, 0
    %p66 = por %p64, %p65
    %p67 = scmp.ne.s32.totalorder %s59, %s61
    %p68 = scmp.eq.s32.totalorder %s16, 1
    %p69 = por %p67, %p68
    %p70 = scmp.ne.s32.totalorder %s61, %s62
    %p71 = scmp.eq.s32.totalorder %s16, 0
    %p72 = por %p70, %p71
    %p73 = scmp.ne.s32.totalorder %s61, %s62
    %p74 = scmp.eq.s32.totalorder %s17, 1
    %p75 = por %p73, %p74
    %p77 = scmp.ne.s32.totalorder %s62, %s76
    %p78 = scmp.eq.s32.totalorder %s17, 0
    %p79 = por %p77, %p78
    %s81 = sadd.s32 %s80, 1
    %p84 = scmp.eq.s32.totalorder %s11, 1
    %p85 = scmp.ne.s32.totalorder %s80, %s82
    %p86 = scmp.eq.s32.totalorder %s11, 0
    %p87 = por %p85, %p86
    %p88 = scmp.ne.s32.totalorder %s80, %s82
    %p89 = scmp.eq.s32.totalorder %s16, 1
    %p90 = por %p88, %p89
    %p91 = scmp.ne.s32.totalorder %s82, %s83
    %p92 = scmp.eq.s32.totalorder %s16, 0
    %p93 = por %p91, %p92
    %p94 = scmp.ne.s32.totalorder %s82, %s83
    %p95 = scmp.eq.s32.totalorder %s17, 1
    %p96 = por %p94, %p95
    %p98 = scmp.ne.s32.totalorder %s83, %s97
    %p99 = scmp.eq.s32.totalorder %s17, 0
    %p100 = por %p98, %p99
    %s102 = sadd.s32 %s101, 1
    %p105 = scmp.eq.s32.totalorder %s11, 1
    %p106 = scmp.ne.s32.totalorder %s101, %s103
    %p107 = scmp.eq.s32.totalorder %s11, 0
    %p108 = por %p106, %p107
    %p109 = scmp.ne.s32.totalorder %s101, %s103
    %p110 = scmp.eq.s32.totalorder %s16, 1
    %p111 = por %p109, %p110
    %p112 = scmp.ne.s32.totalorder %s103, %s104
    %p113 = scmp.eq.s32.totalorder %s16, 0
    %p114 = por %p112, %p113
    %p115 = scmp.ne.s32.totalorder %s103, %s104
    %p116 = scmp.eq.s32.totalorder %s17, 1
    %p117 = por %p115, %p116
    %p119 = scmp.ne.s32.totalorder %s104, %s118
    %p120 = scmp.eq.s32.totalorder %s17, 0
    %p121 = por %p119, %p120
    %s123 = sadd.s32 %s122, 1
    %p126 = scmp.eq.s32.totalorder %s11, 1
    %p127 = scmp.ne.s32.totalorder %s122, %s124
    %p128 = scmp.eq.s32.totalorder %s11, 0
    %p129 = por %p127, %p128
    %p130 = scmp.ne.s32.totalorder %s122, %s124
    %p131 = scmp.eq.s32.totalorder %s16, 1
    %p132 = por %p130, %p131
    %p133 = scmp.ne.s32.totalorder %s124, %s125
    %p134 = scmp.eq.s32.totalorder %s16, 0
    %p135 = por %p133, %p134
    %p136 = scmp.ne.s32.totalorder %s124, %s125
    %p137 = scmp.eq.s32.totalorder %s17, 1
    %p138 = por %p136, %p137
    %p140 = scmp.ne.s32.totalorder %s125, %s139
    %p141 = scmp.eq.s32.totalorder %s17, 0
    %p142 = por %p140, %p141
    %s143 = ssub.s32 %s18, %s30
    %s144 = ssub.s32 %s19, %s26
    %s145 = sor.u32 %s143, %s144
    %p146 = scmp.eq.s32.totalorder %s145, 0
    %s148 = sadd.s32 %s147, 1
    %s149 = scalar_select %p146, %s147, %s148
    %p152 = pneg %p146
    %p153 = scmp.eq.s32.totalorder %s11, 1
    %p154 = por %p152, %p153
    %p155 = scmp.ne.s32.totalorder %s147, %s150
    %p156 = scmp.eq.s32.totalorder %s11, 0
    %p157 = por %p155, %p156
    %p158 = scmp.ne.s32.totalorder %s147, %s150
    %p159 = scmp.eq.s32.totalorder %s16, 1
    %p160 = por %p158, %p159
    %p161 = scmp.ne.s32.totalorder %s150, %s151
    %p162 = scmp.eq.s32.totalorder %s16, 0
    %p163 = por %p161, %p162
    %p164 = scmp.ne.s32.totalorder %s150, %s151
    %p165 = scmp.eq.s32.totalorder %s17, 1
    %p166 = por %p164, %p165
    %p168 = scmp.ne.s32.totalorder %s151, %s167
    %p169 = scmp.eq.s32.totalorder %s17, 0
    %p170 = por %p168, %p169
    %p171 = scmp.le.s32.totalorder 1, %s11
    %p172 = scmp.lt.s32.totalorder %s11, 3
    %p173 = pnand %p171, %p172
    %p174 = pneg %p173
    // Predicated region
    $region9: #{px_forward.9} parent=5 // pred_check
      _
    $region10: #{px_forward.9} parent=5 // pred_check_branch
      %176 = sbr.rel (%p173) target = $region12
    $region11: #{px_forward.9} parent=5 // pred_region
      %s177 = ssub.s32 %s11, 1
      // Predicated region
      $region13: #{px_forward.9} parent=11 // pred_check
        %p178 = pneg %p72
      $region14: #{px_forward.9} parent=11 // pred_check_branch
        %180 = sbr.rel (%p178) target = $region16
      $region15: #{px_forward.9} parent=11 // pred_region
        _
      $region16: #{px_forward.9} parent=11 // pred_fallthru
        _
      // Predicated region
      $region17: #{px_forward.9} parent=11 // pred_check
        %p181 = pneg %p93
      $region18: #{px_forward.9} parent=11 // pred_check_branch
        %183 = sbr.rel (%p181) target = $region20
      $region19: #{px_forward.9} parent=11 // pred_region
        _
      $region20: #{px_forward.9} parent=11 // pred_fallthru
        _
      // Predicated region
      $region21: #{px_forward.9} parent=11 // pred_check
        %p184 = pneg %p114
      $region22: #{px_forward.9} parent=11 // pred_check_branch
        %186 = sbr.rel (%p184) target = $region24
      $region23: #{px_forward.9} parent=11 // pred_region
        _
      $region24: #{px_forward.9} parent=11 // pred_fallthru
        _
      // Predicated region
      $region25: #{px_forward.9} parent=11 // pred_check
        %p187 = pneg %p135
      $region26: #{px_forward.9} parent=11 // pred_check_branch
        %189 = sbr.rel (%p187) target = $region28
      $region27: #{px_forward.9} parent=11 // pred_region
        _
      $region28: #{px_forward.9} parent=11 // pred_fallthru
        _
    $region12: #{px_forward.9} parent=5 // pred_fallthru
      _
    %p190 = scmp.lt.s32.totalorder %s11, 2
    // Predicated region
    $region29: #{px_forward.9} parent=5 // pred_check
      %p191 = pneg %p190
    $region30: #{px_forward.9} parent=5 // pred_check_branch
      %193 = sbr.rel (%p191) target = $region32
    $region31: #{px_forward.9} parent=5 // pred_region
      // Predicated region
      $region33: #{px_forward.9} parent=31 // pred_check
        %p194 = pneg %p45
      $region34: #{px_forward.9} parent=31 // pred_check_branch
        %196 = sbr.rel (%p194) target = $region36
      $region35: #{px_forward.9} parent=31 // pred_region
        %p197 = scmp.lt.s32.totalorder %s18, 1
        %s198 = scalar_select %p197, %s18, 1
        %p199 = scmp.lt.s32.totalorder %s19, 0
        %s200 = scalar_select %p199, %s19, 0
        %s201 = smul.addr %s200, 4
        %s202 = smul.addr %s198, 4
        %s203 = sadd.s32 %s201, %s202
        %s204 = smul.addr %s203, 8
        %s205 = scalar_lea.vmem %s0, %s204
      $region36: #{px_forward.9} parent=31 // pred_fallthru
        _
    $region32: #{px_forward.9} parent=5 // pred_fallthru
      _
    %p206 = scmp.le.s32.totalorder 1, %s11
    %p207 = scmp.lt.s32.totalorder %s11, 3
    %p208 = pnand %p206, %p207
    %p209 = pneg %p208
    // Predicated region
    $region37: #{px_forward.9} parent=5 // pred_check
      _
    $region38: #{px_forward.9} parent=5 // pred_check_branch
      %211 = sbr.rel (%p208) target = $region40
    $region39: #{px_forward.9} parent=5 // pred_region
      %s212 = ssub.s32 %s11, 1
      %p213 = scmp.lt.s32.totalorder %s20, 1
      %s214 = scalar_select %p213, %s20, 1
      %p215 = scmp.lt.s32.totalorder %s21, 0
      %s216 = scalar_select %p215, %s21, 0
      %s217 = smul.addr %s216, 4
      %s218 = smul.addr %s214, 4
      %s219 = sadd.s32 %s217, %s218
      %s220 = smul.addr %s219, 8
      %s221 = scalar_lea.vmem %s0, %s220
      %p222 = pneg %p51
      %p223 = pneg %p48
      %p224 = pneg %p72
      %p225 = pneg %p69
      %p226 = pneg %p93
      %p227 = pneg %p90
      %p228 = pneg %p114
      %p229 = pneg %p111
      %p230 = pneg %p135
      %p231 = pneg %p132
      %p232 = pneg %p163
      %p233 = pneg %p160
      %p234 = scmp.lt.s32.totalorder %s20, 1
      %s235 = scalar_select %p234, %s20, 1
      %p236 = scmp.lt.s32.totalorder %s21, 0
      %s237 = scalar_select %p236, %s21, 0
      %s238 = sadd.s32 %s237, %s235
      %s239 = smul.addr %s238, 8
      %s240 = scalar_lea.vmem %s5, %s239
      %p241 = scmp.lt.s32.totalorder %s20, 1
      %s242 = scalar_select %p241, %s20, 1
      %p243 = scmp.lt.s32.totalorder %s21, 0
      %s244 = scalar_select %p243, %s21, 0
      %s245 = smul.addr %s244, 4
      %s246 = smul.addr %s242, 4
      %s247 = sadd.s32 %s245, %s246
      %s248 = smul.addr %s247, 8
      %s249 = scalar_lea.vmem %s0, %s248
      %p250 = scmp.lt.s32.totalorder %s20, 1
      %s251 = scalar_select %p250, %s20, 1
      %p252 = scmp.lt.s32.totalorder %s21, 0
      %s253 = scalar_select %p252, %s21, 0
      %s254 = sadd.s32 %s253, %s251
      %s255 = smul.addr %s254, 8
      %s256 = scalar_lea.vmem %s5, %s255
      %v258 = vld [vmem:[%s249] sm:$0x3f]
      %v259 = vld [vmem:[%s249 + $0x8] sm:$0x3f]
      %v260 = vld [vmem:[%s249 + $0x10] sm:$0x3f]
      %v261 = vld [vmem:[%s249 + $0x18] sm:$0x3f]
      %v262 = vld [vmem:[%s1] sm:$0xf]
      %v264 = vlaneseq
      %v265 = vshrl.u32 %v264, 7
      %v266 = vsub.s32 0, %v265
      %v267 = vrot.slane %v262, %v266
      %v268 = vlaneseq
      %v269 = vshrl.u32 %v268, 7
      %v270 = vsub.s32 1, %v269
      %v271 = vrot.slane %v262, %v270
      %v272 = vlaneseq
      %v273 = vshrl.u32 %v272, 7
      %v274 = vsub.s32 2, %v273
      %v275 = vrot.slane %v262, %v274
      %v276 = vlaneseq
      %v277 = vshrl.u32 %v276, 7
      %v278 = vsub.s32 3, %v277
      %v279 = vrot.slane %v262, %v278
      %v284 = vmul.f32 %v258, %v267
      %v285 = vmul.f32 %v259, %v271
      %v286 = vmul.f32 %v260, %v275
      %v287 = vmul.f32 %v261, %v279
      %v288 = vld [vmem:[%s2] sm:$0xf]
      %v290 = vlaneseq
      %v291 = vshrl.u32 %v290, 7
      %v292 = vsub.s32 0, %v291
      %v293 = vrot.slane %v288, %v292
      %v294 = vlaneseq
      %v295 = vshrl.u32 %v294, 7
      %v296 = vsub.s32 1, %v295
      %v297 = vrot.slane %v288, %v296
      %v298 = vlaneseq
      %v299 = vshrl.u32 %v298, 7
      %v300 = vsub.s32 2, %v299
      %v301 = vrot.slane %v288, %v300
      %v302 = vlaneseq
      %v303 = vshrl.u32 %v302, 7
      %v304 = vsub.s32 3, %v303
      %v305 = vrot.slane %v288, %v304
      %v310 = vadd.f32 %v284, %v293
      %v311 = vadd.f32 %v285, %v297
      %v312 = vadd.f32 %v286, %v301
      %v313 = vadd.f32 %v287, %v305
      %v314 = vmax.f32 %v310, 0.0
      %v315 = vmax.f32 %v311, 0.0
      %v316 = vmax.f32 %v312, 0.0
      %v317 = vmax.f32 %v313, 0.0
      %v318 = vld [vmem:[%s3] sm:$0xf]
      %v319 = vld [vmem:[%s3 + $0x4] sm:$0xf]
      %v320 = vld [vmem:[%s3 + $0x8] sm:$0xf]
      %v321 = vld [vmem:[%s3 + $0xc] sm:$0xf]
      %v322 = vld [vmem:[%s3 + $0x10] sm:$0xf]
      %v323 = vld [vmem:[%s3 + $0x14] sm:$0xf]
      %v324 = vld [vmem:[%s3 + $0x18] sm:$0xf]
      %v325 = vld [vmem:[%s3 + $0x1c] sm:$0xf]
      %v326 = vld [vmem:[%s3 + $0x20] sm:$0xf]
      %v327 = vld [vmem:[%s3 + $0x24] sm:$0xf]
      %v328 = vld [vmem:[%s3 + $0x28] sm:$0xf]
      %v329 = vld [vmem:[%s3 + $0x2c] sm:$0xf]
      %v330 = vld [vmem:[%s3 + $0x30] sm:$0xf]
      %v331 = vld [vmem:[%s3 + $0x34] sm:$0xf]
      %v332 = vld [vmem:[%s3 + $0x38] sm:$0xf]
      %v333 = vld [vmem:[%s3 + $0x3c] sm:$0xf]
      %v334 = vld [vmem:[%s3 + $0x40] sm:$0xf]
      %v335 = vld [vmem:[%s3 + $0x44] sm:$0xf]
      %v336 = vld [vmem:[%s3 + $0x48] sm:$0xf]
      %v337 = vld [vmem:[%s3 + $0x4c] sm:$0xf]
      %v338 = vld [vmem:[%s3 + $0x50] sm:$0xf]
      %v339 = vld [vmem:[%s3 + $0x54] sm:$0xf]
      %v340 = vld [vmem:[%s3 + $0x58] sm:$0xf]
      %v341 = vld [vmem:[%s3 + $0x5c] sm:$0xf]
      %v342 = vld [vmem:[%s3 + $0x60] sm:$0xf]
      %v343 = vld [vmem:[%s3 + $0x64] sm:$0xf]
      %v344 = vld [vmem:[%s3 + $0x68] sm:$0xf]
      %v345 = vld [vmem:[%s3 + $0x6c] sm:$0xf]
      %v346 = vld [vmem:[%s3 + $0x70] sm:$0xf]
      %v347 = vld [vmem:[%s3 + $0x74] sm:$0xf]
      %v348 = vld [vmem:[%s3 + $0x78] sm:$0xf]
      %v349 = vld [vmem:[%s3 + $0x7c] sm:$0xf]
      %v350 = vld [vmem:[%s3 + $0x80] sm:$0xf]
      %v351 = vld [vmem:[%s3 + $0x84] sm:$0xf]
      %v352 = vld [vmem:[%s3 + $0x88] sm:$0xf]
      %v353 = vld [vmem:[%s3 + $0x8c] sm:$0xf]
      %v354 = vld [vmem:[%s3 + $0x90] sm:$0xf]
      %v355 = vld [vmem:[%s3 + $0x94] sm:$0xf]
      %v356 = vld [vmem:[%s3 + $0x98] sm:$0xf]
      %v357 = vld [vmem:[%s3 + $0x9c] sm:$0xf]
      %v358 = vld [vmem:[%s3 + $0xa0] sm:$0xf]
      %v359 = vld [vmem:[%s3 + $0xa4] sm:$0xf]
      %v360 = vld [vmem:[%s3 + $0xa8] sm:$0xf]
      %v361 = vld [vmem:[%s3 + $0xac] sm:$0xf]
      %v362 = vld [vmem:[%s3 + $0xb0] sm:$0xf]
      %v363 = vld [vmem:[%s3 + $0xb4] sm:$0xf]
      %v364 = vld [vmem:[%s3 + $0xb8] sm:$0xf]
      %v365 = vld [vmem:[%s3 + $0xbc] sm:$0xf]
      %v366 = vld [vmem:[%s3 + $0xc0] sm:$0xf]
      %v367 = vld [vmem:[%s3 + $0xc4] sm:$0xf]
      %v368 = vld [vmem:[%s3 + $0xc8] sm:$0xf]
      %v369 = vld [vmem:[%s3 + $0xcc] sm:$0xf]
      %v370 = vld [vmem:[%s3 + $0xd0] sm:$0xf]
      %v371 = vld [vmem:[%s3 + $0xd4] sm:$0xf]
      %v372 = vld [vmem:[%s3 + $0xd8] sm:$0xf]
      %v373 = vld [vmem:[%s3 + $0xdc] sm:$0xf]
      %v374 = vld [vmem:[%s3 + $0xe0] sm:$0xf]
      %v375 = vld [vmem:[%s3 + $0xe4] sm:$0xf]
      %v376 = vld [vmem:[%s3 + $0xe8] sm:$0xf]
      %v377 = vld [vmem:[%s3 + $0xec] sm:$0xf]
      %v378 = vld [vmem:[%s3 + $0xf0] sm:$0xf]
      %v379 = vld [vmem:[%s3 + $0xf4] sm:$0xf]
      %v380 = vld [vmem:[%s3 + $0xf8] sm:$0xf]
      %v381 = vld [vmem:[%s3 + $0xfc] sm:$0xf]
      %v382 = vpack.c.bf16 %v314, %v314
      %v383 = vpack.c.bf16 %v315, %v315
      %v384 = vpack.c.bf16 %v316, %v316
      %v385 = vpack.c.bf16 %v317, %v317
      %v386 = vld [vmem:[%s4] sm:$0x1]
      %v388 = vlaneseq
      %v389 = vshrl.u32 %v388, 7
      %v390 = vsub.s32 0, %v389
      %v391 = vrot.slane %v386, %v390
      %v457 = vunpack.c.l.b16 %v318
      %v458 = vunpack.c.l.b16 %v319
      %v459 = vunpack.c.l.b16 %v320
      %v460 = vunpack.c.l.b16 %v321
      %v461 = vunpack.c.l.b16 %v322
      %v462 = vunpack.c.l.b16 %v323
      %v463 = vunpack.c.l.b16 %v324
      %v464 = vunpack.c.l.b16 %v325
      %v465 = vunpack.c.l.b16 %v326
      %v466 = vunpack.c.l.b16 %v327
      %v467 = vunpack.c.l.b16 %v328
      %v468 = vunpack.c.l.b16 %v329
      %v469 = vunpack.c.l.b16 %v330
      %v470 = vunpack.c.l.b16 %v331
      %v471 = vunpack.c.l.b16 %v332
      %v472 = vunpack.c.l.b16 %v333
      %v473 = vunpack.c.l.b16 %v334
      %v474 = vunpack.c.l.b16 %v335
      %v475 = vunpack.c.l.b16 %v336
      %v476 = vunpack.c.l.b16 %v337
      %v477 = vunpack.c.l.b16 %v338
      %v478 = vunpack.c.l.b16 %v339
      %v479 = vunpack.c.l.b16 %v340
      %v480 = vunpack.c.l.b16 %v341
      %v481 = vunpack.c.l.b16 %v342
      %v482 = vunpack.c.l.b16 %v343
      %v483 = vunpack.c.l.b16 %v344
      %v484 = vunpack.c.l.b16 %v345
      %v485 = vunpack.c.l.b16 %v346
      %v486 = vunpack.c.l.b16 %v347
      %v487 = vunpack.c.l.b16 %v348
      %v488 = vunpack.c.l.b16 %v349
      %v489 = vunpack.c.l.b16 %v350
      %v490 = vunpack.c.l.b16 %v351
      %v491 = vunpack.c.l.b16 %v352
      %v492 = vunpack.c.l.b16 %v353
      %v493 = vunpack.c.l.b16 %v354
      %v494 = vunpack.c.l.b16 %v355
      %v495 = vunpack.c.l.b16 %v356
      %v496 = vunpack.c.l.b16 %v357
      %v497 = vunpack.c.l.b16 %v358
      %v498 = vunpack.c.l.b16 %v359
      %v499 = vunpack.c.l.b16 %v360
      %v500 = vunpack.c.l.b16 %v361
      %v501 = vunpack.c.l.b16 %v362
      %v502 = vunpack.c.l.b16 %v363
      %v503 = vunpack.c.l.b16 %v364
      %v504 = vunpack.c.l.b16 %v365
      %v505 = vunpack.c.l.b16 %v366
      %v506 = vunpack.c.l.b16 %v367
      %v507 = vunpack.c.l.b16 %v368
      %v508 = vunpack.c.l.b16 %v369
      %v509 = vunpack.c.l.b16 %v370
      %v510 = vunpack.c.l.b16 %v371
      %v511 = vunpack.c.l.b16 %v372
      %v512 = vunpack.c.l.b16 %v373
      %v513 = vunpack.c.l.b16 %v374
      %v514 = vunpack.c.l.b16 %v375
      %v515 = vunpack.c.l.b16 %v376
      %v516 = vunpack.c.l.b16 %v377
      %v517 = vunpack.c.l.b16 %v378
      %v518 = vunpack.c.l.b16 %v379
      %v519 = vunpack.c.l.b16 %v380
      %v520 = vunpack.c.l.b16 %v381
      %v521 = vpack.c.b16 %v458, %v457
      %v522 = vpack.c.b16 %v460, %v459
      %v523 = vpack.c.b16 %v462, %v461
      %v524 = vpack.c.b16 %v464, %v463
      %v525 = vpack.c.b16 %v466, %v465
      %v526 = vpack.c.b16 %v468, %v467
      %v527 = vpack.c.b16 %v470, %v469
      %v528 = vpack.c.b16 %v472, %v471
      %v529 = vpack.c.b16 %v474, %v473
      %v530 = vpack.c.b16 %v476, %v475
      %v531 = vpack.c.b16 %v478, %v477
      %v532 = vpack.c.b16 %v480, %v479
      %v533 = vpack.c.b16 %v482, %v481
      %v534 = vpack.c.b16 %v484, %v483
      %v535 = vpack.c.b16 %v486, %v485
      %v536 = vpack.c.b16 %v488, %v487
      %v537 = vpack.c.b16 %v490, %v489
      %v538 = vpack.c.b16 %v492, %v491
      %v539 = vpack.c.b16 %v494, %v493
      %v540 = vpack.c.b16 %v496, %v495
      %v541 = vpack.c.b16 %v498, %v497
      %v542 = vpack.c.b16 %v500, %v499
      %v543 = vpack.c.b16 %v502, %v501
      %v544 = vpack.c.b16 %v504, %v503
      %v545 = vpack.c.b16 %v506, %v505
      %v546 = vpack.c.b16 %v508, %v507
      %v547 = vpack.c.b16 %v510, %v509
      %v548 = vpack.c.b16 %v512, %v511
      %v549 = vpack.c.b16 %v514, %v513
      %v550 = vpack.c.b16 %v516, %v515
      %v551 = vpack.c.b16 %v518, %v517
      %v552 = vpack.c.b16 %v520, %v519
      %585 = vmatprep.subr.bf16.mxu0 0
      %586 = vmatpush1.bf16.msra.mxu0 %v528
      %587 = vmatprep.subr.bf16.mxu0 0
      %588 = vmatpush1.bf16.msra.mxu0 %v527
      %589 = vmatprep.subr.bf16.mxu0 0
      %590 = vmatpush1.bf16.msra.mxu0 %v526
      %591 = vmatprep.subr.bf16.mxu0 0
      %592 = vmatpush1.bf16.msra.mxu0 %v525
      %593 = vmatprep.subr.bf16.mxu0 0
      %594 = vmatpush1.bf16.msra.mxu0 %v524
      %595 = vmatprep.subr.bf16.mxu0 0
      %596 = vmatpush1.bf16.msra.mxu0 %v523
      %597 = vmatprep.subr.bf16.mxu0 0
      %598 = vmatpush1.bf16.msra.mxu0 %v522
      %599 = vmatprep.subr.bf16.mxu0 0
      %600 = vmatpush1.bf16.msra.mxu0 %v521
      %601 = vmatprep.subr.bf16.mxu0 0
      %602 = vmatpush2.bf16.msra.mxu0 %v536
      %603 = vmatprep.subr.bf16.mxu0 0
      %604 = vmatpush2.bf16.msra.mxu0 %v535
      %605 = vmatprep.subr.bf16.mxu0 0
      %606 = vmatpush2.bf16.msra.mxu0 %v534
      %607 = vmatprep.subr.bf16.mxu0 0
      %608 = vmatpush2.bf16.msra.mxu0 %v533
      %609 = vmatprep.subr.bf16.mxu0 0
      %610 = vmatpush2.bf16.msra.mxu0 %v532
      %611 = vmatprep.subr.bf16.mxu0 0
      %612 = vmatpush2.bf16.msra.mxu0 %v531
      %613 = vmatprep.subr.bf16.mxu0 0
      %614 = vmatpush2.bf16.msra.mxu0 %v530
      %615 = vmatprep.subr.bf16.mxu0 0
      %616 = vmatpush2.bf16.msra.mxu0 %v529
      %617 = vmatprep.mubr.bf16.mxu0 %v383
      %618 = vmatmul.mubr.bf16.gmra.mxu0 %v382
      %v619 = vpop.f32.mrf.mxu0
      %v620 = vadd.f32 %v391, %v619
      %v621 = vpop.f32.mrf.mxu0
      %v622 = vpop.f32.mrf.mxu0
      %v623 = vpop.f32.mrf.mxu0
      %624 = vdwg.mxu0
      %625 = vmatprep.subr.bf16.mxu0 0
      %626 = vmatpush1.bf16.msra.mxu0 %v544
      %627 = vmatprep.subr.bf16.mxu0 0
      %628 = vmatpush1.bf16.msra.mxu0 %v543
      %629 = vmatprep.subr.bf16.mxu0 0
      %630 = vmatpush1.bf16.msra.mxu0 %v542
      %631 = vmatprep.subr.bf16.mxu0 0
      %632 = vmatpush1.bf16.msra.mxu0 %v541
      %633 = vmatprep.subr.bf16.mxu0 0
      %634 = vmatpush1.bf16.msra.mxu0 %v540
      %635 = vmatprep.subr.bf16.mxu0 0
      %636 = vmatpush1.bf16.msra.mxu0 %v539
      %637 = vmatprep.subr.bf16.mxu0 0
      %638 = vmatpush1.bf16.msra.mxu0 %v538
      %639 = vmatprep.subr.bf16.mxu0 0
      %640 = vmatpush1.bf16.msra.mxu0 %v537
      %641 = vmatprep.subr.bf16.mxu0 0
      %642 = vmatpush2.bf16.msra.mxu0 %v552
      %643 = vmatprep.subr.bf16.mxu0 0
      %644 = vmatpush2.bf16.msra.mxu0 %v551
      %645 = vmatprep.subr.bf16.mxu0 0
      %646 = vmatpush2.bf16.msra.mxu0 %v550
      %647 = vmatprep.subr.bf16.mxu0 0
      %648 = vmatpush2.bf16.msra.mxu0 %v549
      %649 = vmatprep.subr.bf16.mxu0 0
      %650 = vmatpush2.bf16.msra.mxu0 %v548
      %651 = vmatprep.subr.bf16.mxu0 0
      %652 = vmatpush2.bf16.msra.mxu0 %v547
      %653 = vmatprep.subr.bf16.mxu0 0
      %654 = vmatpush2.bf16.msra.mxu0 %v546
      %655 = vmatprep.subr.bf16.mxu0 0
      %656 = vmatpush2.bf16.msra.mxu0 %v545
      %657 = vmatprep.mubr.bf16.mxu0 %v385
      %658 = vmatmul.mubr.bf16.gmra.mxu0 %v384
      %v659 = vpop.f32.mrf.mxu0
      %v660 = vadd.f32 %v620, %v659
      %v661 = vpop.f32.mrf.mxu0
      %v662 = vpop.f32.mrf.mxu0
      %v663 = vpop.f32.mrf.mxu0
      %664 = vdwg.mxu0
      %665 = vst [vmem:[%s256] sm:$0x3f] %v660
      %p666 = scmp.lt.s32.totalorder %s20, 1
      %s667 = scalar_select %p666, %s20, 1
      %p668 = scmp.lt.s32.totalorder %s21, 0
      %s669 = scalar_select %p668, %s21, 0
      %s670 = sadd.s32 %s669, %s667
      %s671 = smul.addr %s670, 8
      %s672 = scalar_lea.vmem %s5, %s671
      // Predicated region
      $region41: #{px_forward.9} parent=39 // pred_check
        %p673 = pneg %p160
      $region42: #{px_forward.9} parent=39 // pred_check_branch
        %675 = sbr.rel (%p673) target = $region44
      $region43: #{px_forward.9} parent=39 // pred_region
        _
      $region44: #{px_forward.9} parent=39 // pred_fallthru
        _
    $region40: #{px_forward.9} parent=5 // pred_fallthru
      _
    %p676 = scmp.le.s32.totalorder 2, %s11
    // Predicated region
    $region45: #{px_forward.9} parent=5 // pred_check
      %p677 = pneg %p676
    $region46: #{px_forward.9} parent=5 // pred_check_branch
      %679 = sbr.rel (%p677) target = $region48
    $region47: #{px_forward.9} parent=5 // pred_region
      %s680 = ssub.s32 %s11, 2
      // Predicated region
      $region49: #{px_forward.9} parent=47 // pred_check
        %p681 = pneg %p166
      $region50: #{px_forward.9} parent=47 // pred_check_branch
        %683 = sbr.rel (%p681) target = $region52
      $region51: #{px_forward.9} parent=47 // pred_region
        %p684 = scmp.lt.s32.totalorder %s22, 1
        %s685 = scalar_select %p684, %s22, 1
        %p686 = scmp.lt.s32.totalorder %s23, 0
        %s687 = scalar_select %p686, %s23, 0
        %s688 = sadd.s32 %s687, %s685
        %s689 = smul.addr %s688, 8
        %s690 = scalar_lea.vmem %s5, %s689
      $region52: #{px_forward.9} parent=47 // pred_fallthru
        _
    $region48: #{px_forward.9} parent=5 // pred_fallthru
      _
  $region6: #{px_forward.9} parent=0 // loop_footer
    %s15 = sadd.s32 1, %s11
  $region7: #{px_forward.9} parent=0 // loop_footer_branch
    %10 = sbr.rel target = $region3
  $region8: #{px_forward.9} parent=0 // loop_exit
    _

</llo_original>
